<compile_context>
chip_gen: v7x
topology: tpu7x:2x2x1
jax: 0.10.0
libtpu: 0.0.40
codegen_flags: <defaults>
</compile_context>

<pallas_src>
import math

import jax
import jax.numpy as jnp
from jax.experimental import pallas as pl
from jax.experimental.pallas import tpu as pltpu

MIN_VALUE = 0.01
MAX_VALUE = 0.02
IN_FEATURES = 3
OUT_FEATURES = 8

# 128 samples per "row" is the smallest grouping that makes BOTH the packed
# input row (3*128 = 384 lanes) and the packed output row (8*128 = 1024 lanes)
# multiples of 128 (lane-dense, contiguous, free reshapes from natural layout).
SAMPLES_PER_ROW = 128
IN_ROW = IN_FEATURES * SAMPLES_PER_ROW      # 384
OUT_ROW = OUT_FEATURES * SAMPLES_PER_ROW    # 1024

MAX_BLK_ROWS = 1024       # 1024 rows = 131072 samples ≈ 5.5 MiB HBM per step
TARGET_GRID_STEPS = 4     # keep >=2 (ideally 4) steps when possible (v7x megacore)


def _round_up(x, m):
    return ((x + m - 1) // m) * m


def _linear_clamp_kernel(a_ref, b_ref, x_ref, o_ref):
    # a_ref: (384, 1024) structured weight (128 diagonal copies of W^T)
    # b_ref: (1, 1024)   bias tiled 128x
    # x_ref: (BLK, 384)  BLK*128 samples, natural sample-major order
    # o_ref: (BLK, 1024) same samples, natural sample-major output order
    y = jnp.dot(x_ref[...], a_ref[...], preferred_element_type=jnp.float32)
    y = jnp.minimum(jnp.maximum(y + b_ref[...], MIN_VALUE), MAX_VALUE)
    o_ref[...] = y.astype(o_ref.dtype)


def _build_structured_weight(weight):
    # A[p, q] = W[q % 8, p % 3] if (p // 3) == (q // 8) else 0
    # so that  (x_row @ A)[q] = sum_k W[q%8, k] * x[sample q//8, k].
    p = jnp.arange(IN_ROW)
    q = jnp.arange(OUT_ROW)
    same_sample = (p[:, None] // IN_FEATURES) == (q[None, :] // OUT_FEATURES)
    gathered = weight[q[None, :] % OUT_FEATURES, p[:, None] % IN_FEATURES]
    return jnp.where(same_sample, gathered, 0.0).astype(jnp.float32)


@jax.jit
def linear_clamp(x, weight, bias):
    """x: (..., 3) float32; weight: (8, 3) [PyTorch layout]; bias: (8,)."""
    orig_shape = x.shape
    assert orig_shape[-1] == IN_FEATURES
    m = 1
    for d in orig_shape[:-1]:
        m *= d

    # Pad the number of samples only to a multiple of 128 (not the block size).
    m_pad = _round_up(m, SAMPLES_PER_ROW)
    x2d = x.reshape(m, IN_FEATURES)
    if m_pad != m:
        x2d = jnp.pad(x2d, ((0, m_pad - m), (0, 0)))

    n_rows = m_pad // SAMPLES_PER_ROW
    x_rows = x2d.reshape(n_rows, IN_ROW)          # free, contiguous reshape

    # Block-row count: as large as possible while keeping ~TARGET_GRID_STEPS
    # grid steps (so v7x's two TensorCores both get work), capped by VMEM.
    blk = _round_up(max(1, -(-n_rows // TARGET_GRID_STEPS)), 8)
    blk = min(blk, MAX_BLK_ROWS)
    if blk >= n_rows:
        blk = n_rows                               # single full-extent block
    grid = (pl.cdiv(n_rows, blk),)

    a_mat = _build_structured_weight(weight)       # (384, 1024), ~1.5 MiB
    b_rep = jnp.tile(bias.astype(jnp.float32), SAMPLES_PER_ROW).reshape(1, OUT_ROW)

    out_rows = pl.pallas_call(
        _linear_clamp_kernel,
        out_shape=jax.ShapeDtypeStruct((n_rows, OUT_ROW), x.dtype),
        grid=grid,
        in_specs=[
            # weight / bias: constant block index -> fetched once, not per step
            pl.BlockSpec((IN_ROW, OUT_ROW), lambda i: (0, 0)),
            pl.BlockSpec((1, OUT_ROW), lambda i: (0, 0)),
            # packed input rows, tiled along the row axis
            pl.BlockSpec((blk, IN_ROW), lambda i: (i, 0)),
        ],
        out_specs=pl.BlockSpec((blk, OUT_ROW), lambda i: (i, 0)),
        compiler_params=pltpu.CompilerParams(
            dimension_semantics=("parallel",),
            vmem_limit_bytes=48 * 1024 * 1024,
        ),
    )(a_mat, b_rep, x_rows)

    out2d = out_rows.reshape(m_pad, OUT_FEATURES)  # free, contiguous reshape
    if m_pad != m:
        out2d = out2d[:m]
    return out2d.reshape(*orig_shape[:-1], OUT_FEATURES)


if __name__ == "__main__":
    key = jax.random.PRNGKey(0)
    kx, kw, kb = jax.random.split(key, 3)

    # Small shapes: batch=2, spatial=16x16, features=3 (channels-last layout,
    # so Linear(3, 8) acts on the trailing feature axis). 512 samples total.
    x = jax.random.normal(kx, (2, 16, 16, IN_FEATURES), dtype=jnp.float32)

    # Deterministic params (mimics nn.Linear's uniform(-1/sqrt(3), 1/sqrt(3))).
    bound = 1.0 / math.sqrt(IN_FEATURES)
    weight = jax.random.uniform(kw, (OUT_FEATURES, IN_FEATURES),
                                dtype=jnp.float32, minval=-bound, maxval=bound)
    bias = jax.random.uniform(kb, (OUT_FEATURES,),
                              dtype=jnp.float32, minval=-bound, maxval=bound)

    out = jax.block_until_ready(linear_clamp(x, weight, bias))

    # Reference in plain JAX (forced to highest matmul precision).
    ref_lin = jnp.einsum("...k,ck->...c", x, weight,
                         precision=jax.lax.Precision.HIGHEST) + bias
    ref = jnp.clip(ref_lin, MIN_VALUE, MAX_VALUE)

    assert out.shape == (2, 16, 16, OUT_FEATURES)
    # Outputs are clamped into [0.01, 0.02]; tolerance is chosen so only a
    # genuine interleave/weight error (a wrong sample/feature landing in a
    # lane, or a saturation-side flip) can trip it, independent of the MXU's
    # f32 matmul pass count.
    assert jnp.allclose(out, ref, atol=1e-2), "mismatch vs reference"

    print("KERNEL_OK")
</pallas_src>

<mosaic_0001>
module attributes {stable_mosaic.version = 11 : i64} {
  func.func @_linear_clamp_kernel(%arg0: i32, %arg1: memref<384x1024xf32, #tpu.memory_space<vmem>>, %arg2: memref<1x1024xf32, #tpu.memory_space<vmem>>, %arg3: memref<4x384xf32, #tpu.memory_space<vmem>>, %arg4: memref<4x1024xf32, #tpu.memory_space<vmem>>) attributes {dimension_semantics = [#tpu.dimension_semantics<parallel>], iteration_bounds = array<i64: 1>, scalar_prefetch = 0 : i64, scratch_operands = 0 : i64, tpu.core_type = #tpu.core_type<tc>, window_params = [{pipeline_mode = #tpu.pipeline_mode<synchronous>, transform_indices = @transform_0, window_bounds = array<i64: 384, 1024>}, {pipeline_mode = #tpu.pipeline_mode<synchronous>, transform_indices = @transform_1, window_bounds = array<i64: 1, 1024>}, {transform_indices = @transform_2, window_bounds = array<i64: 4, 384>}, {transform_indices = @transform_3, window_bounds = array<i64: 4, 1024>}]} {
    %c0 = arith.constant 0 : index
    %c0_0 = arith.constant 0 : index
    %0 = vector.load %arg3[%c0, %c0_0] : memref<4x384xf32, #tpu.memory_space<vmem>>, vector<4x384xf32>
    %c0_1 = arith.constant 0 : index
    %c0_2 = arith.constant 0 : index
    %1 = vector.load %arg1[%c0_1, %c0_2] : memref<384x1024xf32, #tpu.memory_space<vmem>>, vector<384x1024xf32>
    %cst = arith.constant dense<0.000000e+00> : vector<4x1024xf32>
    %2 = tpu.matmul %0, %1, %cst {dimension_numbers = #tpu.dot_dimension_numbers<[1], [0], [0], [1], [0, 0, 1, 1], [], []>} : vector<4x384xf32>, vector<384x1024xf32>, vector<4x1024xf32> -> vector<4x1024xf32>
    %c0_3 = arith.constant 0 : index
    %c0_4 = arith.constant 0 : index
    %3 = vector.load %arg2[%c0_3, %c0_4] : memref<1x1024xf32, #tpu.memory_space<vmem>>, vector<1x1024xf32>
    %4 = vector.broadcast %3 : vector<1x1024xf32> to vector<4x1024xf32>
    %5 = arith.addf %2, %4 : vector<4x1024xf32>
    %cst_5 = arith.constant 0.00999999977 : f32
    %6 = vector.broadcast %cst_5 : f32 to vector<4x1024xf32>
    %7 = arith.maximumf %5, %6 : vector<4x1024xf32>
    %cst_6 = arith.constant 2.000000e-02 : f32
    %8 = vector.broadcast %cst_6 : f32 to vector<4x1024xf32>
    %9 = arith.minimumf %7, %8 : vector<4x1024xf32>
    %c0_7 = arith.constant 0 : index
    %c0_8 = arith.constant 0 : index
    %10 = vector.load %arg4[%c0_7, %c0_8] : memref<4x1024xf32, #tpu.memory_space<vmem>>, vector<4x1024xf32>
    tpu.vector_store %arg4[%c0_7, %c0_8], %9 {strides = array<i32>} : memref<4x1024xf32, #tpu.memory_space<vmem>>, vector<4x1024xf32>,
    return
  }
  func.func @transform_0(%arg0: i32) -> (i32, i32) {
    %c0_i32 = arith.constant 0 : i32
    %c0_i32_0 = arith.constant 0 : i32
    %c0_i32_1 = arith.constant 0 : i32
    return %c0_i32, %c0_i32_0 : i32, i32
  }
  func.func @transform_1(%arg0: i32) -> (i32, i32) {
    %c0_i32 = arith.constant 0 : i32
    %c0_i32_0 = arith.constant 0 : i32
    %c0_i32_1 = arith.constant 0 : i32
    return %c0_i32, %c0_i32_0 : i32, i32
  }
  func.func @transform_2(%arg0: i32) -> (i32, i32) {
    %c0_i32 = arith.constant 0 : i32
    %c0_i32_0 = arith.constant 0 : i32
    return %arg0, %c0_i32 : i32, i32
  }
  func.func @transform_3(%arg0: i32) -> (i32, i32) {
    %c0_i32 = arith.constant 0 : i32
    %c0_i32_0 = arith.constant 0 : i32
    return %arg0, %c0_i32 : i32, i32
  }
}

</mosaic_0001>

<llo_original>
// kernel: tile.8
$region0: #{tile.8}
  #allocation0 [shape = 's32[1]{0}', space=sflag, size = 0x4, scoped, tag = 'scoped memory for tile.8']
  %s0 = inlined_call_operand.vmem [shape: f32[8], index: 0, kind: input, shape index: {}]
  %s1 = inlined_call_operand.vmem [shape: f32[128,8], index: 1, kind: output, shape index: {}]
  // Predicated region
  $region2: #{tile.8} parent=0 // pred_check
    _
  $region3: #{tile.8} parent=0 // pred_check_branch
    %3 = sbr.rel (0) target = $region5
  $region4: #{tile.8} parent=0 // pred_region
    _
  $region5: #{tile.8} parent=0 // pred_fallthru
    _
  %v4 = vld [vmem:[%s0] ss:$0 sm:$0xff]
  %5 = vst [vmem:[%s1] sm:$0xff] %v4
  %s6 = scalar_lea.vmem %s1, 8
  %7 = vst [vmem:[%s6] sm:$0xff] %v4
  %s8 = scalar_lea.vmem %s1, 16
  %9 = vst [vmem:[%s8] sm:$0xff] %v4
  %s10 = scalar_lea.vmem %s1, 24
  %11 = vst [vmem:[%s10] sm:$0xff] %v4
  %s12 = scalar_lea.vmem %s1, 32
  %13 = vst [vmem:[%s12] sm:$0xff] %v4
  %s14 = scalar_lea.vmem %s1, 40
  %15 = vst [vmem:[%s14] sm:$0xff] %v4
  %s16 = scalar_lea.vmem %s1, 48
  %17 = vst [vmem:[%s16] sm:$0xff] %v4
  %s18 = scalar_lea.vmem %s1, 56
  %19 = vst [vmem:[%s18] sm:$0xff] %v4
  %s20 = scalar_lea.vmem %s1, 64
  %21 = vst [vmem:[%s20] sm:$0xff] %v4
  %s22 = scalar_lea.vmem %s1, 72
  %23 = vst [vmem:[%s22] sm:$0xff] %v4
  %s24 = scalar_lea.vmem %s1, 80
  %25 = vst [vmem:[%s24] sm:$0xff] %v4
  %s26 = scalar_lea.vmem %s1, 88
  %27 = vst [vmem:[%s26] sm:$0xff] %v4
  %s28 = scalar_lea.vmem %s1, 96
  %29 = vst [vmem:[%s28] sm:$0xff] %v4
  %s30 = scalar_lea.vmem %s1, 104
  %31 = vst [vmem:[%s30] sm:$0xff] %v4
  %s32 = scalar_lea.vmem %s1, 112
  %33 = vst [vmem:[%s32] sm:$0xff] %v4
  %s34 = scalar_lea.vmem %s1, 120
  %35 = vst [vmem:[%s34] sm:$0xff] %v4

// kernel: tile.9
$region0: #{tile.9}
  %s0 = inlined_call_operand.vmem [shape: f32[128,8], index: 0, kind: input, shape index: {}]
  %s1 = inlined_call_operand.vmem [shape: f32[1,1024], index: 1, kind: output, shape index: {}]
  $region1: #{tile.9} parent=0
    #allocation0 [shape = 'u8[32768]{0}', space=vmem, size = 0x8000, scoped, tag = 'scoped mem for output reshape']
    %s2 = smov 3
    %v3 = vld [vmem:[%s0] ss:$16 sm:%s2]
    %s4 = smov 12
    %v5 = vld [vmem:[%s0] ss:$16 sm:%s4]
    %vm6 = vcmask 1043458
    %v7 = vsel %vm6, %v5, %v3
    %s8 = smov 48
    %v9 = vld [vmem:[%s0] ss:$16 sm:%s8]
    %vm10 = vcmask 1045508
    %v11 = vsel %vm10, %v9, %v7
    %s12 = smov 192
    %v13 = vld [vmem:[%s0] ss:$16 sm:%s12]
    %vm14 = vcmask 1047558
    %v15 = vsel %vm14, %v13, %v11
    %vm16 = vcmask 64512
    %17 = vst.msk [vmem:[#allocation0] ss:$8 sm:$0xf] %vm16, %v15
    %18 = vst.msk [vmem:[#allocation0] ss:$8 sm:$0xf0] %vm16, %v15
    %s19 = scalar_lea.vmem %s0, 15
    %s20 = smov 3
    %v21 = vld [vmem:[%s19] ss:$16 sm:%s20]
    %s22 = scalar_lea.vmem %s0, 15
    %s23 = smov 12
    %v24 = vld [vmem:[%s22] ss:$16 sm:%s23]
    %vm25 = vcmask 1043458
    %v26 = vsel %vm25, %v24, %v21
    %s27 = scalar_lea.vmem %s0, 15
    %s28 = smov 48
    %v29 = vld [vmem:[%s27] ss:$16 sm:%s28]
    %vm30 = vcmask 1045508
    %v31 = vsel %vm30, %v29, %v26
    %s32 = scalar_lea.vmem %s0, 15
    %s33 = smov 192
    %v34 = vld [vmem:[%s32] ss:$16 sm:%s33]
    %vm35 = vcmask 1047558
    %v36 = vsel %vm35, %v34, %v31
    %37 = vrot.lane.b32.xlu0 %v36, 120
    %v38 = vpop.permute.xlu0 %37
    %vm39 = vcmask 1048512
    %40 = vst.msk [vmem:[#allocation0] ss:$8 sm:$0xf] %vm39, %v38
    %41 = vst.msk [vmem:[#allocation0] ss:$8 sm:$0xf0] %vm39, %v38
    %s42 = scalar_lea.vmem %s0, 14
    %s43 = smov 3
    %v44 = vld [vmem:[%s42] ss:$16 sm:%s43]
    %s45 = scalar_lea.vmem %s0, 14
    %s46 = smov 12
    %v47 = vld [vmem:[%s45] ss:$16 sm:%s46]
    %vm48 = vcmask 1043458
    %v49 = vsel %vm48, %v47, %v44
    %s50 = scalar_lea.vmem %s0, 14
    %s51 = smov 48
    %v52 = vld [vmem:[%s50] ss:$16 sm:%s51]
    %vm53 = vcmask 1045508
    %v54 = vsel %vm53, %v52, %v49
    %s55 = scalar_lea.vmem %s0, 14
    %s56 = smov 192
    %v57 = vld [vmem:[%s55] ss:$16 sm:%s56]
    %vm58 = vcmask 1047558
    %v59 = vsel %vm58, %v57, %v54
    %60 = vrot.lane.b32.xlu0 %v59, 112
    %v61 = vpop.permute.xlu0 %60
    %vm62 = vcmask 982912
    %63 = vst.msk [vmem:[#allocation0] ss:$8 sm:$0xf] %vm62, %v61
    %64 = vst.msk [vmem:[#allocation0] ss:$8 sm:$0xf0] %vm62, %v61
    %s65 = scalar_lea.vmem %s0, 13
    %s66 = smov 3
    %v67 = vld [vmem:[%s65] ss:$16 sm:%s66]
    %s68 = scalar_lea.vmem %s0, 13
    %s69 = smov 12
    %v70 = vld [vmem:[%s68] ss:$16 sm:%s69]
    %vm71 = vcmask 1043458
    %v72 = vsel %vm71, %v70, %v67
    %s73 = scalar_lea.vmem %s0, 13
    %s74 = smov 48
    %v75 = vld [vmem:[%s73] ss:$16 sm:%s74]
    %vm76 = vcmask 1045508
    %v77 = vsel %vm76, %v75, %v72
    %s78 = scalar_lea.vmem %s0, 13
    %s79 = smov 192
    %v80 = vld [vmem:[%s78] ss:$16 sm:%s79]
    %vm81 = vcmask 1047558
    %v82 = vsel %vm81, %v80, %v77
    %83 = vrot.lane.b32.xlu0 %v82, 104
    %v84 = vpop.permute.xlu0 %83
    %vm85 = vcmask 917312
    %86 = vst.msk [vmem:[#allocation0] ss:$8 sm:$0xf] %vm85, %v84
    %87 = vst.msk [vmem:[#allocation0] ss:$8 sm:$0xf0] %vm85, %v84
    %s88 = scalar_lea.vmem %s0, 12
    %s89 = smov 3
    %v90 = vld [vmem:[%s88] ss:$16 sm:%s89]
    %s91 = scalar_lea.vmem %s0, 12
    %s92 = smov 12
    %v93 = vld [vmem:[%s91] ss:$16 sm:%s92]
    %vm94 = vcmask 1043458
    %v95 = vsel %vm94, %v93, %v90
    %s96 = scalar_lea.vmem %s0, 12
    %s97 = smov 48
    %v98 = vld [vmem:[%s96] ss:$16 sm:%s97]
    %vm99 = vcmask 1045508
    %v100 = vsel %vm99, %v98, %v95
    %s101 = scalar_lea.vmem %s0, 12
    %s102 = smov 192
    %v103 = vld [vmem:[%s101] ss:$16 sm:%s102]
    %vm104 = vcmask 1047558
    %v105 = vsel %vm104, %v103, %v100
    %106 = vrot.lane.b32.xlu0 %v105, 96
    %v107 = vpop.permute.xlu0 %106
    %vm108 = vcmask 851712
    %109 = vst.msk [vmem:[#allocation0] ss:$8 sm:$0xf] %vm108, %v107
    %110 = vst.msk [vmem:[#allocation0] ss:$8 sm:$0xf0] %vm108, %v107
    %s111 = scalar_lea.vmem %s0, 11
    %s112 = smov 3
    %v113 = vld [vmem:[%s111] ss:$16 sm:%s112]
    %s114 = scalar_lea.vmem %s0, 11
    %s115 = smov 12
    %v116 = vld [vmem:[%s114] ss:$16 sm:%s115]
    %vm117 = vcmask 1043458
    %v118 = vsel %vm117, %v116, %v113
    %s119 = scalar_lea.vmem %s0, 11
    %s120 = smov 48
    %v121 = vld [vmem:[%s119] ss:$16 sm:%s120]
    %vm122 = vcmask 1045508
    %v123 = vsel %vm122, %v121, %v118
    %s124 = scalar_lea.vmem %s0, 11
    %s125 = smov 192
    %v126 = vld [vmem:[%s124] ss:$16 sm:%s125]
    %vm127 = vcmask 1047558
    %v128 = vsel %vm127, %v126, %v123
    %129 = vrot.lane.b32.xlu0 %v128, 88
    %v130 = vpop.permute.xlu0 %129
    %vm131 = vcmask 786112
    %132 = vst.msk [vmem:[#allocation0] ss:$8 sm:$0xf] %vm131, %v130
    %133 = vst.msk [vmem:[#allocation0] ss:$8 sm:$0xf0] %vm131, %v130
    %s134 = scalar_lea.vmem %s0, 10
    %s135 = smov 3
    %v136 = vld [vmem:[%s134] ss:$16 sm:%s135]
    %s137 = scalar_lea.vmem %s0, 10
    %s138 = smov 12
    %v139 = vld [vmem:[%s137] ss:$16 sm:%s138]
    %vm140 = vcmask 1043458
    %v141 = vsel %vm140, %v139, %v136
    %s142 = scalar_lea.vmem %s0, 10
    %s143 = smov 48
    %v144 = vld [vmem:[%s142] ss:$16 sm:%s143]
    %vm145 = vcmask 1045508
    %v146 = vsel %vm145, %v144, %v141
    %s147 = scalar_lea.vmem %s0, 10
    %s148 = smov 192
    %v149 = vld [vmem:[%s147] ss:$16 sm:%s148]
    %vm150 = vcmask 1047558
    %v151 = vsel %vm150, %v149, %v146
    %152 = vrot.lane.b32.xlu0 %v151, 80
    %v153 = vpop.permute.xlu0 %152
    %vm154 = vcmask 720512
    %155 = vst.msk [vmem:[#allocation0] ss:$8 sm:$0xf] %vm154, %v153
    %156 = vst.msk [vmem:[#allocation0] ss:$8 sm:$0xf0] %vm154, %v153
    %s157 = scalar_lea.vmem %s0, 9
    %s158 = smov 3
    %v159 = vld [vmem:[%s157] ss:$16 sm:%s158]
    %s160 = scalar_lea.vmem %s0, 9
    %s161 = smov 12
    %v162 = vld [vmem:[%s160] ss:$16 sm:%s161]
    %vm163 = vcmask 1043458
    %v164 = vsel %vm163, %v162, %v159
    %s165 = scalar_lea.vmem %s0, 9
    %s166 = smov 48
    %v167 = vld [vmem:[%s165] ss:$16 sm:%s166]
    %vm168 = vcmask 1045508
    %v169 = vsel %vm168, %v167, %v164
    %s170 = scalar_lea.vmem %s0, 9
    %s171 = smov 192
    %v172 = vld [vmem:[%s170] ss:$16 sm:%s171]
    %vm173 = vcmask 1047558
    %v174 = vsel %vm173, %v172, %v169
    %175 = vrot.lane.b32.xlu0 %v174, 72
    %v176 = vpop.permute.xlu0 %175
    %vm177 = vcmask 654912
    %178 = vst.msk [vmem:[#allocation0] ss:$8 sm:$0xf] %vm177, %v176
    %179 = vst.msk [vmem:[#allocation0] ss:$8 sm:$0xf0] %vm177, %v176
    %s180 = scalar_lea.vmem %s0, 8
    %s181 = smov 3
    %v182 = vld [vmem:[%s180] ss:$16 sm:%s181]
    %s183 = scalar_lea.vmem %s0, 8
    %s184 = smov 12
    %v185 = vld [vmem:[%s183] ss:$16 sm:%s184]
    %vm186 = vcmask 1043458
    %v187 = vsel %vm186, %v185, %v182
    %s188 = scalar_lea.vmem %s0, 8
    %s189 = smov 48
    %v190 = vld [vmem:[%s188] ss:$16 sm:%s189]
    %vm191 = vcmask 1045508
    %v192 = vsel %vm191, %v190, %v187
    %s193 = scalar_lea.vmem %s0, 8
    %s194 = smov 192
    %v195 = vld [vmem:[%s193] ss:$16 sm:%s194]
    %vm196 = vcmask 1047558
    %v197 = vsel %vm196, %v195, %v192
    %198 = vrot.lane.b32.xlu0 %v197, 64
    %v199 = vpop.permute.xlu0 %198
    %vm200 = vcmask 589312
    %201 = vst.msk [vmem:[#allocation0] ss:$8 sm:$0xf] %vm200, %v199
    %202 = vst.msk [vmem:[#allocation0] ss:$8 sm:$0xf0] %vm200, %v199
    %s203 = scalar_lea.vmem %s0, 7
    %s204 = smov 3
    %v205 = vld [vmem:[%s203] ss:$16 sm:%s204]
    %s206 = scalar_lea.vmem %s0, 7
    %s207 = smov 12
    %v208 = vld [vmem:[%s206] ss:$16 sm:%s207]
    %vm209 = vcmask 1043458
    %v210 = vsel %vm209, %v208, %v205
    %s211 = scalar_lea.vmem %s0, 7
    %s212 = smov 48
    %v213 = vld [vmem:[%s211] ss:$16 sm:%s212]
    %vm214 = vcmask 1045508
    %v215 = vsel %vm214, %v213, %v210
    %s216 = scalar_lea.vmem %s0, 7
    %s217 = smov 192
    %v218 = vld [vmem:[%s216] ss:$16 sm:%s217]
    %vm219 = vcmask 1047558
    %v220 = vsel %vm219, %v218, %v215
    %221 = vrot.lane.b32.xlu0 %v220, 56
    %v222 = vpop.permute.xlu0 %221
    %vm223 = vcmask 523712
    %224 = vst.msk [vmem:[#allocation0] ss:$8 sm:$0xf] %vm223, %v222
    %225 = vst.msk [vmem:[#allocation0] ss:$8 sm:$0xf0] %vm223, %v222
    %s226 = scalar_lea.vmem %s0, 6
    %s227 = smov 3
    %v228 = vld [vmem:[%s226] ss:$16 sm:%s227]
    %s229 = scalar_lea.vmem %s0, 6
    %s230 = smov 12
    %v231 = vld [vmem:[%s229] ss:$16 sm:%s230]
    %vm232 = vcmask 1043458
    %v233 = vsel %vm232, %v231, %v228
    %s234 = scalar_lea.vmem %s0, 6
    %s235 = smov 48
    %v236 = vld [vmem:[%s234] ss:$16 sm:%s235]
    %vm237 = vcmask 1045508
    %v238 = vsel %vm237, %v236, %v233
    %s239 = scalar_lea.vmem %s0, 6
    %s240 = smov 192
    %v241 = vld [vmem:[%s239] ss:$16 sm:%s240]
    %vm242 = vcmask 1047558
    %v243 = vsel %vm242, %v241, %v238
    %244 = vrot.lane.b32.xlu0 %v243, 48
    %v245 = vpop.permute.xlu0 %244
    %vm246 = vcmask 458112
    %247 = vst.msk [vmem:[#allocation0] ss:$8 sm:$0xf] %vm246, %v245
    %248 = vst.msk [vmem:[#allocation0] ss:$8 sm:$0xf0] %vm246, %v245
    %s249 = scalar_lea.vmem %s0, 5
    %s250 = smov 3
    %v251 = vld [vmem:[%s249] ss:$16 sm:%s250]
    %s252 = scalar_lea.vmem %s0, 5
    %s253 = smov 12
    %v254 = vld [vmem:[%s252] ss:$16 sm:%s253]
    %vm255 = vcmask 1043458
    %v256 = vsel %vm255, %v254, %v251
    %s257 = scalar_lea.vmem %s0, 5
    %s258 = smov 48
    %v259 = vld [vmem:[%s257] ss:$16 sm:%s258]
    %vm260 = vcmask 1045508
    %v261 = vsel %vm260, %v259, %v256
    %s262 = scalar_lea.vmem %s0, 5
    %s263 = smov 192
    %v264 = vld [vmem:[%s262] ss:$16 sm:%s263]
    %vm265 = vcmask 1047558
    %v266 = vsel %vm265, %v264, %v261
    %267 = vrot.lane.b32.xlu0 %v266, 40
    %v268 = vpop.permute.xlu0 %267
    %vm269 = vcmask 392512
    %270 = vst.msk [vmem:[#allocation0] ss:$8 sm:$0xf] %vm269, %v268
    %271 = vst.msk [vmem:[#allocation0] ss:$8 sm:$0xf0] %vm269, %v268
    %s272 = scalar_lea.vmem %s0, 4
    %s273 = smov 3
    %v274 = vld [vmem:[%s272] ss:$16 sm:%s273]
    %s275 = scalar_lea.vmem %s0, 4
    %s276 = smov 12
    %v277 = vld [vmem:[%s275] ss:$16 sm:%s276]
    %vm278 = vcmask 1043458
    %v279 = vsel %vm278, %v277, %v274
    %s280 = scalar_lea.vmem %s0, 4
    %s281 = smov 48
    %v282 = vld [vmem:[%s280] ss:$16 sm:%s281]
    %vm283 = vcmask 1045508
    %v284 = vsel %vm283, %v282, %v279
    %s285 = scalar_lea.vmem %s0, 4
    %s286 = smov 192
    %v287 = vld [vmem:[%s285] ss:$16 sm:%s286]
    %vm288 = vcmask 1047558
    %v289 = vsel %vm288, %v287, %v284
    %290 = vrot.lane.b32.xlu0 %v289, 32
    %v291 = vpop.permute.xlu0 %290
    %vm292 = vcmask 326912
    %293 = vst.msk [vmem:[#allocation0] ss:$8 sm:$0xf] %vm292, %v291
    %294 = vst.msk [vmem:[#allocation0] ss:$8 sm:$0xf0] %vm292, %v291
    %s295 = scalar_lea.vmem %s0, 3
    %s296 = smov 3
    %v297 = vld [vmem:[%s295] ss:$16 sm:%s296]
    %s298 = scalar_lea.vmem %s0, 3
    %s299 = smov 12
    %v300 = vld [vmem:[%s298] ss:$16 sm:%s299]
    %vm301 = vcmask 1043458
    %v302 = vsel %vm301, %v300, %v297
    %s303 = scalar_lea.vmem %s0, 3
    %s304 = smov 48
    %v305 = vld [vmem:[%s303] ss:$16 sm:%s304]
    %vm306 = vcmask 1045508
    %v307 = vsel %vm306, %v305, %v302
    %s308 = scalar_lea.vmem %s0, 3
    %s309 = smov 192
    %v310 = vld [vmem:[%s308] ss:$16 sm:%s309]
    %vm311 = vcmask 1047558
    %v312 = vsel %vm311, %v310, %v307
    %313 = vrot.lane.b32.xlu0 %v312, 24
    %v314 = vpop.permute.xlu0 %313
    %vm315 = vcmask 261312
    %316 = vst.msk [vmem:[#allocation0] ss:$8 sm:$0xf] %vm315, %v314
    %317 = vst.msk [vmem:[#allocation0] ss:$8 sm:$0xf0] %vm315, %v314
    %s318 = scalar_lea.vmem %s0, 2
    %s319 = smov 3
    %v320 = vld [vmem:[%s318] ss:$16 sm:%s319]
    %s321 = scalar_lea.vmem %s0, 2
    %s322 = smov 12
    %v323 = vld [vmem:[%s321] ss:$16 sm:%s322]
    %vm324 = vcmask 1043458
    %v325 = vsel %vm324, %v323, %v320
    %s326 = scalar_lea.vmem %s0, 2
    %s327 = smov 48
    %v328 = vld [vmem:[%s326] ss:$16 sm:%s327]
    %vm329 = vcmask 1045508
    %v330 = vsel %vm329, %v328, %v325
    %s331 = scalar_lea.vmem %s0, 2
    %s332 = smov 192
    %v333 = vld [vmem:[%s331] ss:$16 sm:%s332]
    %vm334 = vcmask 1047558
    %v335 = vsel %vm334, %v333, %v330
    %336 = vrot.lane.b32.xlu0 %v335, 16
    %v337 = vpop.permute.xlu0 %336
    %vm338 = vcmask 195712
    %339 = vst.msk [vmem:[#allocation0] ss:$8 sm:$0xf] %vm338, %v337
    %340 = vst.msk [vmem:[#allocation0] ss:$8 sm:$0xf0] %vm338, %v337
    %s341 = scalar_lea.vmem %s0, 1
    %s342 = smov 3
    %v343 = vld [vmem:[%s341] ss:$16 sm:%s342]
    %s344 = scalar_lea.vmem %s0, 1
    %s345 = smov 12
    %v346 = vld [vmem:[%s344] ss:$16 sm:%s345]
    %vm347 = vcmask 1043458
    %v348 = vsel %vm347, %v346, %v343
    %s349 = scalar_lea.vmem %s0, 1
    %s350 = smov 48
    %v351 = vld [vmem:[%s349] ss:$16 sm:%s350]
    %vm352 = vcmask 1045508
    %v353 = vsel %vm352, %v351, %v348
    %s354 = scalar_lea.vmem %s0, 1
    %s355 = smov 192
    %v356 = vld [vmem:[%s354] ss:$16 sm:%s355]
    %vm357 = vcmask 1047558
    %v358 = vsel %vm357, %v356, %v353
    %359 = vrot.lane.b32.xlu0 %v358, 8
    %v360 = vpop.permute.xlu0 %359
    %vm361 = vcmask 130112
    %362 = vst.msk [vmem:[#allocation0] ss:$8 sm:$0xf] %vm361, %v360
    %363 = vst.msk [vmem:[#allocation0] ss:$8 sm:$0xf0] %vm361, %v360
    %s365 = sshllo.u32 0, 1
    %v367 = vld [vmem:[#allocation0] sm:%s365]
    %s368 = sshllo.u32 0, 1
    %369 = vst [vmem:[%s1] sm:%s368] %v367
    %s370 = scalar_lea.vmem [#allocation0], 8
    %v371 = vld [vmem:[%s370] sm:%s365]
    %s372 = sshllo.u32 0, 1
    %s373 = scalar_lea.vmem %s1, 1
    %374 = vst [vmem:[%s373] sm:%s372] %v371
    %s375 = scalar_lea.vmem [#allocation0], 16
    %v376 = vld [vmem:[%s375] sm:%s365]
    %s377 = sshllo.u32 0, 1
    %s378 = smul.addr 1, 2
    %s379 = scalar_lea.vmem %s1, %s378
    %380 = vst [vmem:[%s379] sm:%s377] %v376
    %s381 = scalar_lea.vmem [#allocation0], 24
    %v382 = vld [vmem:[%s381] sm:%s365]
    %s383 = sshllo.u32 0, 1
    %s384 = smul.addr 1, 3
    %s385 = scalar_lea.vmem %s1, %s384
    %386 = vst [vmem:[%s385] sm:%s383] %v382
    %s387 = scalar_lea.vmem [#allocation0], 32
    %v388 = vld [vmem:[%s387] sm:%s365]
    %s389 = sshllo.u32 0, 1
    %s390 = smul.addr 1, 4
    %s391 = scalar_lea.vmem %s1, %s390
    %392 = vst [vmem:[%s391] sm:%s389] %v388
    %s393 = scalar_lea.vmem [#allocation0], 40
    %v394 = vld [vmem:[%s393] sm:%s365]
    %s395 = sshllo.u32 0, 1
    %s396 = smul.addr 1, 5
    %s397 = scalar_lea.vmem %s1, %s396
    %398 = vst [vmem:[%s397] sm:%s395] %v394
    %s399 = scalar_lea.vmem [#allocation0], 48
    %v400 = vld [vmem:[%s399] sm:%s365]
    %s401 = sshllo.u32 0, 1
    %s402 = smul.addr 1, 6
    %s403 = scalar_lea.vmem %s1, %s402
    %404 = vst [vmem:[%s403] sm:%s401] %v400
    %s405 = scalar_lea.vmem [#allocation0], 56
    %v406 = vld [vmem:[%s405] sm:%s365]
    %s407 = sshllo.u32 0, 1
    %s408 = smul.addr 1, 7
    %s409 = scalar_lea.vmem %s1, %s408
    %410 = vst [vmem:[%s409] sm:%s407] %v406

// kernel: linear_clamp.1
$region0: #{linear_clamp.1}
  #allocation0 [shape = 'u32[]', space=smem, size = 0x4, offset = 0x4, fixed_abs, tag = 'smem constant byte address 0x4 - core index']
  #allocation1 [shape = 'u32[144,128]{1,0:T(1,128)}', space=vmem, size = 0x12000, scoped, tag = 'internal scratch']
  %s0 = inlined_call_operand.vmem [shape: f32[384,1024], index: 0, kind: input, shape index: {}]
  %s1 = inlined_call_operand.vmem [shape: f32[1,1024], index: 1, kind: input, shape index: {}]
  %s2 = inlined_call_operand.vmem [shape: f32[4,384], index: 2, kind: input, shape index: {}]
  %s3 = inlined_call_operand.vmem [shape: f32[4,1024], index: 3, kind: output, shape index: {}]
  %s4 = sld [smem:[#allocation0]]
  $region22: #{linear_clamp.1} parent=0
    _
  %s6 = ssub.s32 1, %s4
  %s7 = scalar_select 0, %s6, %s4
  // Predicated region
  $region2: #{linear_clamp.1} parent=0 // pred_check
    _
  $region3: #{linear_clamp.1} parent=0 // pred_check_branch
    %9 = sbr.rel (0) target = $region5
  $region4: #{linear_clamp.1} parent=0 // pred_region
    _
  $region5: #{linear_clamp.1} parent=0 // pred_fallthru
    _
  // Predicated region
  $region6: #{linear_clamp.1} parent=0 // pred_check
    _
  $region7: #{linear_clamp.1} parent=0 // pred_check_branch
    %11 = sbr.rel (0) target = $region9
  $region8: #{linear_clamp.1} parent=0 // pred_region
    _
  $region9: #{linear_clamp.1} parent=0 // pred_fallthru
    _
  // Predicated region
  $region10: #{linear_clamp.1} parent=0 // pred_check
    _
  $region11: #{linear_clamp.1} parent=0 // pred_check_branch
    %13 = sbr.rel (0) target = $region13
  $region12: #{linear_clamp.1} parent=0 // pred_region
    _
  $region13: #{linear_clamp.1} parent=0 // pred_fallthru
    _
  %v14 = vld [vmem:[%s2] sm:$0xff]
  %v15 = vld [vmem:[%s2 + $0x8] sm:$0xf]
  %v16 = vld [vmem:[%s0] sm:$0xff]
  %v17 = vld [vmem:[%s0 + $0x8] sm:$0xff]
  %v18 = vld [vmem:[%s0 + $0x10] sm:$0xff]
  %v19 = vld [vmem:[%s0 + $0x18] sm:$0xff]
  %v20 = vld [vmem:[%s0 + $0x20] sm:$0xff]
  %v21 = vld [vmem:[%s0 + $0x28] sm:$0xff]
  %v22 = vld [vmem:[%s0 + $0x30] sm:$0xff]
  %v23 = vld [vmem:[%s0 + $0x38] sm:$0xff]
  %v24 = vld [vmem:[%s0 + $0x40] sm:$0xff]
  %v25 = vld [vmem:[%s0 + $0x48] sm:$0xff]
  %v26 = vld [vmem:[%s0 + $0x50] sm:$0xff]
  %v27 = vld [vmem:[%s0 + $0x58] sm:$0xff]
  %v28 = vld [vmem:[%s0 + $0x60] sm:$0xff]
  %v29 = vld [vmem:[%s0 + $0x68] sm:$0xff]
  %v30 = vld [vmem:[%s0 + $0x70] sm:$0xff]
  %v31 = vld [vmem:[%s0 + $0x78] sm:$0xff]
  %v32 = vld [vmem:[%s0 + $0x80] sm:$0xff]
  %v33 = vld [vmem:[%s0 + $0x88] sm:$0xff]
  %v34 = vld [vmem:[%s0 + $0x90] sm:$0xff]
  %v35 = vld [vmem:[%s0 + $0x98] sm:$0xff]
  %v36 = vld [vmem:[%s0 + $0xa0] sm:$0xff]
  %v37 = vld [vmem:[%s0 + $0xa8] sm:$0xff]
  %v38 = vld [vmem:[%s0 + $0xb0] sm:$0xff]
  %v39 = vld [vmem:[%s0 + $0xb8] sm:$0xff]
  %v40 = vld [vmem:[%s0 + $0xc0] sm:$0xff]
  %v41 = vld [vmem:[%s0 + $0xc8] sm:$0xff]
  %v42 = vld [vmem:[%s0 + $0xd0] sm:$0xff]
  %v43 = vld [vmem:[%s0 + $0xd8] sm:$0xff]
  %v44 = vld [vmem:[%s0 + $0xe0] sm:$0xff]
  %v45 = vld [vmem:[%s0 + $0xe8] sm:$0xff]
  %v46 = vld [vmem:[%s0 + $0xf0] sm:$0xff]
  %v47 = vld [vmem:[%s0 + $0xf8] sm:$0xff]
  %v48 = vld [vmem:[%s0 + $0x100] sm:$0xff]
  %v49 = vld [vmem:[%s0 + $0x108] sm:$0xff]
  %v50 = vld [vmem:[%s0 + $0x110] sm:$0xff]
  %v51 = vld [vmem:[%s0 + $0x118] sm:$0xff]
  %v52 = vld [vmem:[%s0 + $0x120] sm:$0xff]
  %v53 = vld [vmem:[%s0 + $0x128] sm:$0xff]
  %v54 = vld [vmem:[%s0 + $0x130] sm:$0xff]
  %v55 = vld [vmem:[%s0 + $0x138] sm:$0xff]
  %v56 = vld [vmem:[%s0 + $0x140] sm:$0xff]
  %v57 = vld [vmem:[%s0 + $0x148] sm:$0xff]
  %v58 = vld [vmem:[%s0 + $0x150] sm:$0xff]
  %v59 = vld [vmem:[%s0 + $0x158] sm:$0xff]
  %v60 = vld [vmem:[%s0 + $0x160] sm:$0xff]
  %v61 = vld [vmem:[%s0 + $0x168] sm:$0xff]
  %v62 = vld [vmem:[%s0 + $0x170] sm:$0xff]
  %v63 = vld [vmem:[%s0 + $0x178] sm:$0xff]
  %v64 = vld [vmem:[%s0 + $0x180] sm:$0xff]
  %v65 = vld [vmem:[%s0 + $0x188] sm:$0xff]
  %v66 = vld [vmem:[%s0 + $0x190] sm:$0xff]
  %v67 = vld [vmem:[%s0 + $0x198] sm:$0xff]
  %v68 = vld [vmem:[%s0 + $0x1a0] sm:$0xff]
  %v69 = vld [vmem:[%s0 + $0x1a8] sm:$0xff]
  %v70 = vld [vmem:[%s0 + $0x1b0] sm:$0xff]
  %v71 = vld [vmem:[%s0 + $0x1b8] sm:$0xff]
  %v72 = vld [vmem:[%s0 + $0x1c0] sm:$0xff]
  %v73 = vld [vmem:[%s0 + $0x1c8] sm:$0xff]
  %v74 = vld [vmem:[%s0 + $0x1d0] sm:$0xff]
  %v75 = vld [vmem:[%s0 + $0x1d8] sm:$0xff]
  %v76 = vld [vmem:[%s0 + $0x1e0] sm:$0xff]
  %v77 = vld [vmem:[%s0 + $0x1e8] sm:$0xff]
  %v78 = vld [vmem:[%s0 + $0x1f0] sm:$0xff]
  %v79 = vld [vmem:[%s0 + $0x1f8] sm:$0xff]
  %v80 = vld [vmem:[%s0 + $0x200] sm:$0xff]
  %v81 = vld [vmem:[%s0 + $0x208] sm:$0xff]
  %v82 = vld [vmem:[%s0 + $0x210] sm:$0xff]
  %v83 = vld [vmem:[%s0 + $0x218] sm:$0xff]
  %v84 = vld [vmem:[%s0 + $0x220] sm:$0xff]
  %v85 = vld [vmem:[%s0 + $0x228] sm:$0xff]
  %v86 = vld [vmem:[%s0 + $0x230] sm:$0xff]
  %v87 = vld [vmem:[%s0 + $0x238] sm:$0xff]
  %v88 = vld [vmem:[%s0 + $0x240] sm:$0xff]
  %v89 = vld [vmem:[%s0 + $0x248] sm:$0xff]
  %v90 = vld [vmem:[%s0 + $0x250] sm:$0xff]
  %v91 = vld [vmem:[%s0 + $0x258] sm:$0xff]
  %v92 = vld [vmem:[%s0 + $0x260] sm:$0xff]
  %v93 = vld [vmem:[%s0 + $0x268] sm:$0xff]
  %v94 = vld [vmem:[%s0 + $0x270] sm:$0xff]
  %v95 = vld [vmem:[%s0 + $0x278] sm:$0xff]
  %v96 = vld [vmem:[%s0 + $0x280] sm:$0xff]
  %v97 = vld [vmem:[%s0 + $0x288] sm:$0xff]
  %v98 = vld [vmem:[%s0 + $0x290] sm:$0xff]
  %v99 = vld [vmem:[%s0 + $0x298] sm:$0xff]
  %v100 = vld [vmem:[%s0 + $0x2a0] sm:$0xff]
  %v101 = vld [vmem:[%s0 + $0x2a8] sm:$0xff]
  %v102 = vld [vmem:[%s0 + $0x2b0] sm:$0xff]
  %v103 = vld [vmem:[%s0 + $0x2b8] sm:$0xff]
  %v104 = vld [vmem:[%s0 + $0x2c0] sm:$0xff]
  %v105 = vld [vmem:[%s0 + $0x2c8] sm:$0xff]
  %v106 = vld [vmem:[%s0 + $0x2d0] sm:$0xff]
  %v107 = vld [vmem:[%s0 + $0x2d8] sm:$0xff]
  %v108 = vld [vmem:[%s0 + $0x2e0] sm:$0xff]
  %v109 = vld [vmem:[%s0 + $0x2e8] sm:$0xff]
  %v110 = vld [vmem:[%s0 + $0x2f0] sm:$0xff]
  %v111 = vld [vmem:[%s0 + $0x2f8] sm:$0xff]
  %v112 = vld [vmem:[%s0 + $0x300] sm:$0xff]
  %v113 = vld [vmem:[%s0 + $0x308] sm:$0xff]
  %v114 = vld [vmem:[%s0 + $0x310] sm:$0xff]
  %v115 = vld [vmem:[%s0 + $0x318] sm:$0xff]
  %v116 = vld [vmem:[%s0 + $0x320] sm:$0xff]
  %v117 = vld [vmem:[%s0 + $0x328] sm:$0xff]
  %v118 = vld [vmem:[%s0 + $0x330] sm:$0xff]
  %v119 = vld [vmem:[%s0 + $0x338] sm:$0xff]
  %v120 = vld [vmem:[%s0 + $0x340] sm:$0xff]
  %v121 = vld [vmem:[%s0 + $0x348] sm:$0xff]
  %v122 = vld [vmem:[%s0 + $0x350] sm:$0xff]
  %v123 = vld [vmem:[%s0 + $0x358] sm:$0xff]
  %v124 = vld [vmem:[%s0 + $0x360] sm:$0xff]
  %v125 = vld [vmem:[%s0 + $0x368] sm:$0xff]
  %v126 = vld [vmem:[%s0 + $0x370] sm:$0xff]
  %v127 = vld [vmem:[%s0 + $0x378] sm:$0xff]
  %v128 = vld [vmem:[%s0 + $0x380] sm:$0xff]
  %v129 = vld [vmem:[%s0 + $0x388] sm:$0xff]
  %v130 = vld [vmem:[%s0 + $0x390] sm:$0xff]
  %v131 = vld [vmem:[%s0 + $0x398] sm:$0xff]
  %v132 = vld [vmem:[%s0 + $0x3a0] sm:$0xff]
  %v133 = vld [vmem:[%s0 + $0x3a8] sm:$0xff]
  %v134 = vld [vmem:[%s0 + $0x3b0] sm:$0xff]
  %v135 = vld [vmem:[%s0 + $0x3b8] sm:$0xff]
  %v136 = vld [vmem:[%s0 + $0x3c0] sm:$0xff]
  %v137 = vld [vmem:[%s0 + $0x3c8] sm:$0xff]
  %v138 = vld [vmem:[%s0 + $0x3d0] sm:$0xff]
  %v139 = vld [vmem:[%s0 + $0x3d8] sm:$0xff]
  %v140 = vld [vmem:[%s0 + $0x3e0] sm:$0xff]
  %v141 = vld [vmem:[%s0 + $0x3e8] sm:$0xff]
  %v142 = vld [vmem:[%s0 + $0x3f0] sm:$0xff]
  %v143 = vld [vmem:[%s0 + $0x3f8] sm:$0xff]
  %v144 = vld [vmem:[%s0 + $0x400] sm:$0xff]
  %v145 = vld [vmem:[%s0 + $0x408] sm:$0xff]
  %v146 = vld [vmem:[%s0 + $0x410] sm:$0xff]
  %v147 = vld [vmem:[%s0 + $0x418] sm:$0xff]
  %v148 = vld [vmem:[%s0 + $0x420] sm:$0xff]
  %v149 = vld [vmem:[%s0 + $0x428] sm:$0xff]
  %v150 = vld [vmem:[%s0 + $0x430] sm:$0xff]
  %v151 = vld [vmem:[%s0 + $0x438] sm:$0xff]
  %v152 = vld [vmem:[%s0 + $0x440] sm:$0xff]
  %v153 = vld [vmem:[%s0 + $0x448] sm:$0xff]
  %v154 = vld [vmem:[%s0 + $0x450] sm:$0xff]
  %v155 = vld [vmem:[%s0 + $0x458] sm:$0xff]
  %v156 = vld [vmem:[%s0 + $0x460] sm:$0xff]
  %v157 = vld [vmem:[%s0 + $0x468] sm:$0xff]
  %v158 = vld [vmem:[%s0 + $0x470] sm:$0xff]
  %v159 = vld [vmem:[%s0 + $0x478] sm:$0xff]
  %v160 = vld [vmem:[%s0 + $0x480] sm:$0xff]
  %v161 = vld [vmem:[%s0 + $0x488] sm:$0xff]
  %v162 = vld [vmem:[%s0 + $0x490] sm:$0xff]
  %v163 = vld [vmem:[%s0 + $0x498] sm:$0xff]
  %v164 = vld [vmem:[%s0 + $0x4a0] sm:$0xff]
  %v165 = vld [vmem:[%s0 + $0x4a8] sm:$0xff]
  %v166 = vld [vmem:[%s0 + $0x4b0] sm:$0xff]
  %v167 = vld [vmem:[%s0 + $0x4b8] sm:$0xff]
  %v168 = vld [vmem:[%s0 + $0x4c0] sm:$0xff]
  %v169 = vld [vmem:[%s0 + $0x4c8] sm:$0xff]
  %v170 = vld [vmem:[%s0 + $0x4d0] sm:$0xff]
  %v171 = vld [vmem:[%s0 + $0x4d8] sm:$0xff]
  %v172 = vld [vmem:[%s0 + $0x4e0] sm:$0xff]
  %v173 = vld [vmem:[%s0 + $0x4e8] sm:$0xff]
  %v174 = vld [vmem:[%s0 + $0x4f0] sm:$0xff]
  %v175 = vld [vmem:[%s0 + $0x4f8] sm:$0xff]
  %v176 = vld [vmem:[%s0 + $0x500] sm:$0xff]
  %v177 = vld [vmem:[%s0 + $0x508] sm:$0xff]
  %v178 = vld [vmem:[%s0 + $0x510] sm:$0xff]
  %v179 = vld [vmem:[%s0 + $0x518] sm:$0xff]
  %v180 = vld [vmem:[%s0 + $0x520] sm:$0xff]
  %v181 = vld [vmem:[%s0 + $0x528] sm:$0xff]
  %v182 = vld [vmem:[%s0 + $0x530] sm:$0xff]
  %v183 = vld [vmem:[%s0 + $0x538] sm:$0xff]
  %v184 = vld [vmem:[%s0 + $0x540] sm:$0xff]
  %v185 = vld [vmem:[%s0 + $0x548] sm:$0xff]
  %v186 = vld [vmem:[%s0 + $0x550] sm:$0xff]
  %v187 = vld [vmem:[%s0 + $0x558] sm:$0xff]
  %v188 = vld [vmem:[%s0 + $0x560] sm:$0xff]
  %v189 = vld [vmem:[%s0 + $0x568] sm:$0xff]
  %v190 = vld [vmem:[%s0 + $0x570] sm:$0xff]
  %v191 = vld [vmem:[%s0 + $0x578] sm:$0xff]
  %v192 = vld [vmem:[%s0 + $0x580] sm:$0xff]
  %v193 = vld [vmem:[%s0 + $0x588] sm:$0xff]
  %v194 = vld [vmem:[%s0 + $0x590] sm:$0xff]
  %v195 = vld [vmem:[%s0 + $0x598] sm:$0xff]
  %v196 = vld [vmem:[%s0 + $0x5a0] sm:$0xff]
  %v197 = vld [vmem:[%s0 + $0x5a8] sm:$0xff]
  %v198 = vld [vmem:[%s0 + $0x5b0] sm:$0xff]
  %v199 = vld [vmem:[%s0 + $0x5b8] sm:$0xff]
  %v200 = vld [vmem:[%s0 + $0x5c0] sm:$0xff]
  %v201 = vld [vmem:[%s0 + $0x5c8] sm:$0xff]
  %v202 = vld [vmem:[%s0 + $0x5d0] sm:$0xff]
  %v203 = vld [vmem:[%s0 + $0x5d8] sm:$0xff]
  %v204 = vld [vmem:[%s0 + $0x5e0] sm:$0xff]
  %v205 = vld [vmem:[%s0 + $0x5e8] sm:$0xff]
  %v206 = vld [vmem:[%s0 + $0x5f0] sm:$0xff]
  %v207 = vld [vmem:[%s0 + $0x5f8] sm:$0xff]
  %v208 = vld [vmem:[%s0 + $0x600] sm:$0xff]
  %v209 = vld [vmem:[%s0 + $0x608] sm:$0xff]
  %v210 = vld [vmem:[%s0 + $0x610] sm:$0xff]
  %v211 = vld [vmem:[%s0 + $0x618] sm:$0xff]
  %v212 = vld [vmem:[%s0 + $0x620] sm:$0xff]
  %v213 = vld [vmem:[%s0 + $0x628] sm:$0xff]
  %v214 = vld [vmem:[%s0 + $0x630] sm:$0xff]
  %v215 = vld [vmem:[%s0 + $0x638] sm:$0xff]
  %v216 = vld [vmem:[%s0 + $0x640] sm:$0xff]
  %v217 = vld [vmem:[%s0 + $0x648] sm:$0xff]
  %v218 = vld [vmem:[%s0 + $0x650] sm:$0xff]
  %v219 = vld [vmem:[%s0 + $0x658] sm:$0xff]
  %v220 = vld [vmem:[%s0 + $0x660] sm:$0xff]
  %v221 = vld [vmem:[%s0 + $0x668] sm:$0xff]
  %v222 = vld [vmem:[%s0 + $0x670] sm:$0xff]
  %v223 = vld [vmem:[%s0 + $0x678] sm:$0xff]
  %v224 = vld [vmem:[%s0 + $0x680] sm:$0xff]
  %v225 = vld [vmem:[%s0 + $0x688] sm:$0xff]
  %v226 = vld [vmem:[%s0 + $0x690] sm:$0xff]
  %v227 = vld [vmem:[%s0 + $0x698] sm:$0xff]
  %v228 = vld [vmem:[%s0 + $0x6a0] sm:$0xff]
  %v229 = vld [vmem:[%s0 + $0x6a8] sm:$0xff]
  %v230 = vld [vmem:[%s0 + $0x6b0] sm:$0xff]
  %v231 = vld [vmem:[%s0 + $0x6b8] sm:$0xff]
  %v232 = vld [vmem:[%s0 + $0x6c0] sm:$0xff]
  %v233 = vld [vmem:[%s0 + $0x6c8] sm:$0xff]
  %v234 = vld [vmem:[%s0 + $0x6d0] sm:$0xff]
  %v235 = vld [vmem:[%s0 + $0x6d8] sm:$0xff]
  %v236 = vld [vmem:[%s0 + $0x6e0] sm:$0xff]
  %v237 = vld [vmem:[%s0 + $0x6e8] sm:$0xff]
  %v238 = vld [vmem:[%s0 + $0x6f0] sm:$0xff]
  %v239 = vld [vmem:[%s0 + $0x6f8] sm:$0xff]
  %v240 = vld [vmem:[%s0 + $0x700] sm:$0xff]
  %v241 = vld [vmem:[%s0 + $0x708] sm:$0xff]
  %v242 = vld [vmem:[%s0 + $0x710] sm:$0xff]
  %v243 = vld [vmem:[%s0 + $0x718] sm:$0xff]
  %v244 = vld [vmem:[%s0 + $0x720] sm:$0xff]
  %v245 = vld [vmem:[%s0 + $0x728] sm:$0xff]
  %v246 = vld [vmem:[%s0 + $0x730] sm:$0xff]
  %v247 = vld [vmem:[%s0 + $0x738] sm:$0xff]
  %v248 = vld [vmem:[%s0 + $0x740] sm:$0xff]
  %v249 = vld [vmem:[%s0 + $0x748] sm:$0xff]
  %v250 = vld [vmem:[%s0 + $0x750] sm:$0xff]
  %v251 = vld [vmem:[%s0 + $0x758] sm:$0xff]
  %v252 = vld [vmem:[%s0 + $0x760] sm:$0xff]
  %v253 = vld [vmem:[%s0 + $0x768] sm:$0xff]
  %v254 = vld [vmem:[%s0 + $0x770] sm:$0xff]
  %v255 = vld [vmem:[%s0 + $0x778] sm:$0xff]
  %v256 = vld [vmem:[%s0 + $0x780] sm:$0xff]
  %v257 = vld [vmem:[%s0 + $0x788] sm:$0xff]
  %v258 = vld [vmem:[%s0 + $0x790] sm:$0xff]
  %v259 = vld [vmem:[%s0 + $0x798] sm:$0xff]
  %v260 = vld [vmem:[%s0 + $0x7a0] sm:$0xff]
  %v261 = vld [vmem:[%s0 + $0x7a8] sm:$0xff]
  %v262 = vld [vmem:[%s0 + $0x7b0] sm:$0xff]
  %v263 = vld [vmem:[%s0 + $0x7b8] sm:$0xff]
  %v264 = vld [vmem:[%s0 + $0x7c0] sm:$0xff]
  %v265 = vld [vmem:[%s0 + $0x7c8] sm:$0xff]
  %v266 = vld [vmem:[%s0 + $0x7d0] sm:$0xff]
  %v267 = vld [vmem:[%s0 + $0x7d8] sm:$0xff]
  %v268 = vld [vmem:[%s0 + $0x7e0] sm:$0xff]
  %v269 = vld [vmem:[%s0 + $0x7e8] sm:$0xff]
  %v270 = vld [vmem:[%s0 + $0x7f0] sm:$0xff]
  %v271 = vld [vmem:[%s0 + $0x7f8] sm:$0xff]
  %v272 = vld [vmem:[%s0 + $0x800] sm:$0xff]
  %v273 = vld [vmem:[%s0 + $0x808] sm:$0xff]
  %v274 = vld [vmem:[%s0 + $0x810] sm:$0xff]
  %v275 = vld [vmem:[%s0 + $0x818] sm:$0xff]
  %v276 = vld [vmem:[%s0 + $0x820] sm:$0xff]
  %v277 = vld [vmem:[%s0 + $0x828] sm:$0xff]
  %v278 = vld [vmem:[%s0 + $0x830] sm:$0xff]
  %v279 = vld [vmem:[%s0 + $0x838] sm:$0xff]
  %v280 = vld [vmem:[%s0 + $0x840] sm:$0xff]
  %v281 = vld [vmem:[%s0 + $0x848] sm:$0xff]
  %v282 = vld [vmem:[%s0 + $0x850] sm:$0xff]
  %v283 = vld [vmem:[%s0 + $0x858] sm:$0xff]
  %v284 = vld [vmem:[%s0 + $0x860] sm:$0xff]
  %v285 = vld [vmem:[%s0 + $0x868] sm:$0xff]
  %v286 = vld [vmem:[%s0 + $0x870] sm:$0xff]
  %v287 = vld [vmem:[%s0 + $0x878] sm:$0xff]
  %v288 = vld [vmem:[%s0 + $0x880] sm:$0xff]
  %v289 = vld [vmem:[%s0 + $0x888] sm:$0xff]
  %v290 = vld [vmem:[%s0 + $0x890] sm:$0xff]
  %v291 = vld [vmem:[%s0 + $0x898] sm:$0xff]
  %v292 = vld [vmem:[%s0 + $0x8a0] sm:$0xff]
  %v293 = vld [vmem:[%s0 + $0x8a8] sm:$0xff]
  %v294 = vld [vmem:[%s0 + $0x8b0] sm:$0xff]
  %v295 = vld [vmem:[%s0 + $0x8b8] sm:$0xff]
  %v296 = vld [vmem:[%s0 + $0x8c0] sm:$0xff]
  %v297 = vld [vmem:[%s0 + $0x8c8] sm:$0xff]
  %v298 = vld [vmem:[%s0 + $0x8d0] sm:$0xff]
  %v299 = vld [vmem:[%s0 + $0x8d8] sm:$0xff]
  %v300 = vld [vmem:[%s0 + $0x8e0] sm:$0xff]
  %v301 = vld [vmem:[%s0 + $0x8e8] sm:$0xff]
  %v302 = vld [vmem:[%s0 + $0x8f0] sm:$0xff]
  %v303 = vld [vmem:[%s0 + $0x8f8] sm:$0xff]
  %v304 = vld [vmem:[%s0 + $0x900] sm:$0xff]
  %v305 = vld [vmem:[%s0 + $0x908] sm:$0xff]
  %v306 = vld [vmem:[%s0 + $0x910] sm:$0xff]
  %v307 = vld [vmem:[%s0 + $0x918] sm:$0xff]
  %v308 = vld [vmem:[%s0 + $0x920] sm:$0xff]
  %v309 = vld [vmem:[%s0 + $0x928] sm:$0xff]
  %v310 = vld [vmem:[%s0 + $0x930] sm:$0xff]
  %v311 = vld [vmem:[%s0 + $0x938] sm:$0xff]
  %v312 = vld [vmem:[%s0 + $0x940] sm:$0xff]
  %v313 = vld [vmem:[%s0 + $0x948] sm:$0xff]
  %v314 = vld [vmem:[%s0 + $0x950] sm:$0xff]
  %v315 = vld [vmem:[%s0 + $0x958] sm:$0xff]
  %v316 = vld [vmem:[%s0 + $0x960] sm:$0xff]
  %v317 = vld [vmem:[%s0 + $0x968] sm:$0xff]
  %v318 = vld [vmem:[%s0 + $0x970] sm:$0xff]
  %v319 = vld [vmem:[%s0 + $0x978] sm:$0xff]
  %v320 = vld [vmem:[%s0 + $0x980] sm:$0xff]
  %v321 = vld [vmem:[%s0 + $0x988] sm:$0xff]
  %v322 = vld [vmem:[%s0 + $0x990] sm:$0xff]
  %v323 = vld [vmem:[%s0 + $0x998] sm:$0xff]
  %v324 = vld [vmem:[%s0 + $0x9a0] sm:$0xff]
  %v325 = vld [vmem:[%s0 + $0x9a8] sm:$0xff]
  %v326 = vld [vmem:[%s0 + $0x9b0] sm:$0xff]
  %v327 = vld [vmem:[%s0 + $0x9b8] sm:$0xff]
  %v328 = vld [vmem:[%s0 + $0x9c0] sm:$0xff]
  %v329 = vld [vmem:[%s0 + $0x9c8] sm:$0xff]
  %v330 = vld [vmem:[%s0 + $0x9d0] sm:$0xff]
  %v331 = vld [vmem:[%s0 + $0x9d8] sm:$0xff]
  %v332 = vld [vmem:[%s0 + $0x9e0] sm:$0xff]
  %v333 = vld [vmem:[%s0 + $0x9e8] sm:$0xff]
  %v334 = vld [vmem:[%s0 + $0x9f0] sm:$0xff]
  %v335 = vld [vmem:[%s0 + $0x9f8] sm:$0xff]
  %v336 = vld [vmem:[%s0 + $0xa00] sm:$0xff]
  %v337 = vld [vmem:[%s0 + $0xa08] sm:$0xff]
  %v338 = vld [vmem:[%s0 + $0xa10] sm:$0xff]
  %v339 = vld [vmem:[%s0 + $0xa18] sm:$0xff]
  %v340 = vld [vmem:[%s0 + $0xa20] sm:$0xff]
  %v341 = vld [vmem:[%s0 + $0xa28] sm:$0xff]
  %v342 = vld [vmem:[%s0 + $0xa30] sm:$0xff]
  %v343 = vld [vmem:[%s0 + $0xa38] sm:$0xff]
  %v344 = vld [vmem:[%s0 + $0xa40] sm:$0xff]
  %v345 = vld [vmem:[%s0 + $0xa48] sm:$0xff]
  %v346 = vld [vmem:[%s0 + $0xa50] sm:$0xff]
  %v347 = vld [vmem:[%s0 + $0xa58] sm:$0xff]
  %v348 = vld [vmem:[%s0 + $0xa60] sm:$0xff]
  %v349 = vld [vmem:[%s0 + $0xa68] sm:$0xff]
  %v350 = vld [vmem:[%s0 + $0xa70] sm:$0xff]
  %v351 = vld [vmem:[%s0 + $0xa78] sm:$0xff]
  %v352 = vld [vmem:[%s0 + $0xa80] sm:$0xff]
  %v353 = vld [vmem:[%s0 + $0xa88] sm:$0xff]
  %v354 = vld [vmem:[%s0 + $0xa90] sm:$0xff]
  %v355 = vld [vmem:[%s0 + $0xa98] sm:$0xff]
  %v356 = vld [vmem:[%s0 + $0xaa0] sm:$0xff]
  %v357 = vld [vmem:[%s0 + $0xaa8] sm:$0xff]
  %v358 = vld [vmem:[%s0 + $0xab0] sm:$0xff]
  %v359 = vld [vmem:[%s0 + $0xab8] sm:$0xff]
  %v360 = vld [vmem:[%s0 + $0xac0] sm:$0xff]
  %v361 = vld [vmem:[%s0 + $0xac8] sm:$0xff]
  %v362 = vld [vmem:[%s0 + $0xad0] sm:$0xff]
  %v363 = vld [vmem:[%s0 + $0xad8] sm:$0xff]
  %v364 = vld [vmem:[%s0 + $0xae0] sm:$0xff]
  %v365 = vld [vmem:[%s0 + $0xae8] sm:$0xff]
  %v366 = vld [vmem:[%s0 + $0xaf0] sm:$0xff]
  %v367 = vld [vmem:[%s0 + $0xaf8] sm:$0xff]
  %v368 = vld [vmem:[%s0 + $0xb00] sm:$0xff]
  %v369 = vld [vmem:[%s0 + $0xb08] sm:$0xff]
  %v370 = vld [vmem:[%s0 + $0xb10] sm:$0xff]
  %v371 = vld [vmem:[%s0 + $0xb18] sm:$0xff]
  %v372 = vld [vmem:[%s0 + $0xb20] sm:$0xff]
  %v373 = vld [vmem:[%s0 + $0xb28] sm:$0xff]
  %v374 = vld [vmem:[%s0 + $0xb30] sm:$0xff]
  %v375 = vld [vmem:[%s0 + $0xb38] sm:$0xff]
  %v376 = vld [vmem:[%s0 + $0xb40] sm:$0xff]
  %v377 = vld [vmem:[%s0 + $0xb48] sm:$0xff]
  %v378 = vld [vmem:[%s0 + $0xb50] sm:$0xff]
  %v379 = vld [vmem:[%s0 + $0xb58] sm:$0xff]
  %v380 = vld [vmem:[%s0 + $0xb60] sm:$0xff]
  %v381 = vld [vmem:[%s0 + $0xb68] sm:$0xff]
  %v382 = vld [vmem:[%s0 + $0xb70] sm:$0xff]
  %v383 = vld [vmem:[%s0 + $0xb78] sm:$0xff]
  %v384 = vld [vmem:[%s0 + $0xb80] sm:$0xff]
  %v385 = vld [vmem:[%s0 + $0xb88] sm:$0xff]
  %v386 = vld [vmem:[%s0 + $0xb90] sm:$0xff]
  %v387 = vld [vmem:[%s0 + $0xb98] sm:$0xff]
  %v388 = vld [vmem:[%s0 + $0xba0] sm:$0xff]
  %v389 = vld [vmem:[%s0 + $0xba8] sm:$0xff]
  %v390 = vld [vmem:[%s0 + $0xbb0] sm:$0xff]
  %v391 = vld [vmem:[%s0 + $0xbb8] sm:$0xff]
  %v392 = vld [vmem:[%s0 + $0xbc0] sm:$0xff]
  %v393 = vld [vmem:[%s0 + $0xbc8] sm:$0xff]
  %v394 = vld [vmem:[%s0 + $0xbd0] sm:$0xff]
  %v395 = vld [vmem:[%s0 + $0xbd8] sm:$0xff]
  %v396 = vld [vmem:[%s0 + $0xbe0] sm:$0xff]
  %v397 = vld [vmem:[%s0 + $0xbe8] sm:$0xff]
  %v398 = vld [vmem:[%s0 + $0xbf0] sm:$0xff]
  %v399 = vld [vmem:[%s0 + $0xbf8] sm:$0xff]
  %v400 = vld [vmem:[%s1] sm:$0xff]
  %v402 = vlaneseq
  %v403 = vshrl.u32 %v402, 7
  %v404 = vsub.s32 0, %v403
  %v405 = vrot.slane %v400, %v404
  %v406 = vlaneseq
  %v407 = vshrl.u32 %v406, 7
  %v408 = vsub.s32 1, %v407
  %v409 = vrot.slane %v400, %v408
  %v410 = vlaneseq
  %v411 = vshrl.u32 %v410, 7
  %v412 = vsub.s32 2, %v411
  %v413 = vrot.slane %v400, %v412
  %v414 = vlaneseq
  %v415 = vshrl.u32 %v414, 7
  %v416 = vsub.s32 3, %v415
  %v417 = vrot.slane %v400, %v416
  %v418 = vlaneseq
  %v419 = vshrl.u32 %v418, 7
  %v420 = vsub.s32 4, %v419
  %v421 = vrot.slane %v400, %v420
  %v422 = vlaneseq
  %v423 = vshrl.u32 %v422, 7
  %v424 = vsub.s32 5, %v423
  %v425 = vrot.slane %v400, %v424
  %v426 = vlaneseq
  %v427 = vshrl.u32 %v426, 7
  %v428 = vsub.s32 6, %v427
  %v429 = vrot.slane %v400, %v428
  %v430 = vlaneseq
  %v431 = vshrl.u32 %v430, 7
  %v432 = vsub.s32 7, %v431
  %v433 = vrot.slane %v400, %v432
  %v443 = vcombine.high %v14, %v14
  %445 = vmatprep.subr.mxu0 %v17
  %446 = vmatpush1.msra.mxu0 %v16
  %447 = vmatprep.subr.mxu0 %v25
  %448 = vmatpush1.msra.mxu0 %v24
  %449 = vmatprep.subr.mxu0 %v33
  %450 = vmatpush1.msra.mxu0 %v32
  %451 = vmatprep.subr.mxu0 %v41
  %452 = vmatpush1.msra.mxu0 %v40
  %453 = vmatprep.subr.mxu0 %v49
  %454 = vmatpush1.msra.mxu0 %v48
  %455 = vmatprep.subr.mxu0 %v57
  %456 = vmatpush1.msra.mxu0 %v56
  %457 = vmatprep.subr.mxu0 %v65
  %458 = vmatpush1.msra.mxu0 %v64
  %459 = vmatprep.subr.mxu0 %v73
  %460 = vmatpush1.msra.mxu0 %v72
  %461 = vmatprep.subr.mxu0 %v81
  %462 = vmatpush1.msra.mxu0 %v80
  %463 = vmatprep.subr.mxu0 %v89
  %464 = vmatpush1.msra.mxu0 %v88
  %465 = vmatprep.subr.mxu0 %v97
  %466 = vmatpush1.msra.mxu0 %v96
  %467 = vmatprep.subr.mxu0 %v105
  %468 = vmatpush1.msra.mxu0 %v104
  %469 = vmatprep.subr.mxu0 %v113
  %470 = vmatpush1.msra.mxu0 %v112
  %471 = vmatprep.subr.mxu0 %v121
  %472 = vmatpush1.msra.mxu0 %v120
  %473 = vmatprep.subr.mxu0 %v129
  %474 = vmatpush1.msra.mxu0 %v128
  %475 = vmatprep.subr.mxu0 %v137
  %476 = vmatpush1.msra.mxu0 %v136
  %477 = vmatprep.subr.mxu0 %v145
  %478 = vmatpush1.msra.mxu0 %v144
  %479 = vmatprep.subr.mxu0 %v153
  %480 = vmatpush1.msra.mxu0 %v152
  %481 = vmatprep.subr.mxu0 %v161
  %482 = vmatpush1.msra.mxu0 %v160
  %483 = vmatprep.subr.mxu0 %v169
  %484 = vmatpush1.msra.mxu0 %v168
  %485 = vmatprep.subr.mxu0 %v177
  %486 = vmatpush1.msra.mxu0 %v176
  %487 = vmatprep.subr.mxu0 %v185
  %488 = vmatpush1.msra.mxu0 %v184
  %489 = vmatprep.subr.mxu0 %v193
  %490 = vmatpush1.msra.mxu0 %v192
  %491 = vmatprep.subr.mxu0 %v201
  %492 = vmatpush1.msra.mxu0 %v200
  %493 = vmatprep.subr.mxu0 %v209
  %494 = vmatpush1.msra.mxu0 %v208
  %495 = vmatprep.subr.mxu0 %v217
  %496 = vmatpush1.msra.mxu0 %v216
  %497 = vmatprep.subr.mxu0 %v225
  %498 = vmatpush1.msra.mxu0 %v224
  %499 = vmatprep.subr.mxu0 %v233
  %500 = vmatpush1.msra.mxu0 %v232
  %501 = vmatprep.subr.mxu0 %v241
  %502 = vmatpush1.msra.mxu0 %v240
  %503 = vmatprep.subr.mxu0 %v249
  %504 = vmatpush1.msra.mxu0 %v248
  %505 = vmatprep.subr.mxu0 %v257
  %506 = vmatpush1.msra.mxu0 %v256
  %507 = vmatprep.subr.mxu0 %v265
  %508 = vmatpush1.msra.mxu0 %v264
  %509 = vmatprep.mubr.f32.mxu0 %v443
  %510 = vmatmul.mubr.f32.gmra.mrb[0].mxu0 %v14
  %v511 = vpop.f32.mrb[0].mxu0
  %v512 = vadd.f32 %v405, %v511
  %v513 = vpop.f32.mrb[0].mxu0
  %v514 = vadd.f32 %v409, %v513
  %515 = vdwg.mxu0
  %516 = vmatprep.subr.mxu0 %v273
  %517 = vmatpush1.msra.mxu0 %v272
  %518 = vmatprep.subr.mxu0 %v281
  %519 = vmatpush1.msra.mxu0 %v280
  %520 = vmatprep.subr.mxu0 %v289
  %521 = vmatpush1.msra.mxu0 %v288
  %522 = vmatprep.subr.mxu0 %v297
  %523 = vmatpush1.msra.mxu0 %v296
  %524 = vmatprep.subr.mxu0 %v305
  %525 = vmatpush1.msra.mxu0 %v304
  %526 = vmatprep.subr.mxu0 %v313
  %527 = vmatpush1.msra.mxu0 %v312
  %528 = vmatprep.subr.mxu0 %v321
  %529 = vmatpush1.msra.mxu0 %v320
  %530 = vmatprep.subr.mxu0 %v329
  %531 = vmatpush1.msra.mxu0 %v328
  %532 = vmatprep.subr.mxu0 %v337
  %533 = vmatpush1.msra.mxu0 %v336
  %534 = vmatprep.subr.mxu0 %v345
  %535 = vmatpush1.msra.mxu0 %v344
  %536 = vmatprep.subr.mxu0 %v353
  %537 = vmatpush1.msra.mxu0 %v352
  %538 = vmatprep.subr.mxu0 %v361
  %539 = vmatpush1.msra.mxu0 %v360
  %540 = vmatprep.subr.mxu0 %v369
  %541 = vmatpush1.msra.mxu0 %v368
  %542 = vmatprep.subr.mxu0 %v377
  %543 = vmatpush1.msra.mxu0 %v376
  %544 = vmatprep.subr.mxu0 %v385
  %545 = vmatpush1.msra.mxu0 %v384
  %546 = vmatprep.subr.mxu0 %v393
  %547 = vmatpush1.msra.mxu0 %v392
  %548 = vmatprep.subr.mxu0 0.0
  %549 = vmatpush1.msra.mxu0 0.0
  %550 = vmatprep.subr.mxu0 0.0
  %551 = vmatpush1.msra.mxu0 0.0
  %552 = vmatprep.subr.mxu0 0.0
  %553 = vmatpush1.msra.mxu0 0.0
  %554 = vmatprep.subr.mxu0 0.0
  %555 = vmatpush1.msra.mxu0 0.0
  %556 = vmatprep.subr.mxu0 0.0
  %557 = vmatpush1.msra.mxu0 0.0
  %558 = vmatprep.subr.mxu0 0.0
  %559 = vmatpush1.msra.mxu0 0.0
  %560 = vmatprep.subr.mxu0 0.0
  %561 = vmatpush1.msra.mxu0 0.0
  %562 = vmatprep.subr.mxu0 0.0
  %563 = vmatpush1.msra.mxu0 0.0
  %564 = vmatprep.subr.mxu0 0.0
  %565 = vmatpush1.msra.mxu0 0.0
  %566 = vmatprep.subr.mxu0 0.0
  %567 = vmatpush1.msra.mxu0 0.0
  %568 = vmatprep.subr.mxu0 0.0
  %569 = vmatpush1.msra.mxu0 0.0
  %570 = vmatprep.subr.mxu0 0.0
  %571 = vmatpush1.msra.mxu0 0.0
  %572 = vmatprep.subr.mxu0 0.0
  %573 = vmatpush1.msra.mxu0 0.0
  %574 = vmatprep.subr.mxu0 0.0
  %575 = vmatpush1.msra.mxu0 0.0
  %576 = vmatprep.subr.mxu0 0.0
  %577 = vmatpush1.msra.mxu0 0.0
  %578 = vmatprep.subr.mxu0 0.0
  %579 = vmatpush1.msra.mxu0 0.0
  %580 = vmatprep.mubr.f32.mxu0 0.0
  %581 = vmatmul.mubr.f32.gmra.mrb[0].mxu0 %v15
  %v582 = vpop.f32.mrb[0].mxu0
  %v583 = vadd.f32 %v512, %v582
  %v584 = vpop.f32.mrb[0].mxu0
  %v585 = vadd.f32 %v514, %v584
  %586 = vdwg.mxu0
  %587 = vmatprep.subr.mxu0 %v19
  %588 = vmatpush1.msra.mxu0 %v18
  %589 = vmatprep.subr.mxu0 %v27
  %590 = vmatpush1.msra.mxu0 %v26
  %591 = vmatprep.subr.mxu0 %v35
  %592 = vmatpush1.msra.mxu0 %v34
  %593 = vmatprep.subr.mxu0 %v43
  %594 = vmatpush1.msra.mxu0 %v42
  %595 = vmatprep.subr.mxu0 %v51
  %596 = vmatpush1.msra.mxu0 %v50
  %597 = vmatprep.subr.mxu0 %v59
  %598 = vmatpush1.msra.mxu0 %v58
  %599 = vmatprep.subr.mxu0 %v67
  %600 = vmatpush1.msra.mxu0 %v66
  %601 = vmatprep.subr.mxu0 %v75
  %602 = vmatpush1.msra.mxu0 %v74
  %603 = vmatprep.subr.mxu0 %v83
  %604 = vmatpush1.msra.mxu0 %v82
  %605 = vmatprep.subr.mxu0 %v91
  %606 = vmatpush1.msra.mxu0 %v90
  %607 = vmatprep.subr.mxu0 %v99
  %608 = vmatpush1.msra.mxu0 %v98
  %609 = vmatprep.subr.mxu0 %v107
  %610 = vmatpush1.msra.mxu0 %v106
  %611 = vmatprep.subr.mxu0 %v115
  %612 = vmatpush1.msra.mxu0 %v114
  %613 = vmatprep.subr.mxu0 %v123
  %614 = vmatpush1.msra.mxu0 %v122
  %615 = vmatprep.subr.mxu0 %v131
  %616 = vmatpush1.msra.mxu0 %v130
  %617 = vmatprep.subr.mxu0 %v139
  %618 = vmatpush1.msra.mxu0 %v138
  %619 = vmatprep.subr.mxu0 %v147
  %620 = vmatpush1.msra.mxu0 %v146
  %621 = vmatprep.subr.mxu0 %v155
  %622 = vmatpush1.msra.mxu0 %v154
  %623 = vmatprep.subr.mxu0 %v163
  %624 = vmatpush1.msra.mxu0 %v162
  %625 = vmatprep.subr.mxu0 %v171
  %626 = vmatpush1.msra.mxu0 %v170
  %627 = vmatprep.subr.mxu0 %v179
  %628 = vmatpush1.msra.mxu0 %v178
  %629 = vmatprep.subr.mxu0 %v187
  %630 = vmatpush1.msra.mxu0 %v186
  %631 = vmatprep.subr.mxu0 %v195
  %632 = vmatpush1.msra.mxu0 %v194
  %633 = vmatprep.subr.mxu0 %v203
  %634 = vmatpush1.msra.mxu0 %v202
  %635 = vmatprep.subr.mxu0 %v211
  %636 = vmatpush1.msra.mxu0 %v210
  %637 = vmatprep.subr.mxu0 %v219
  %638 = vmatpush1.msra.mxu0 %v218
  %639 = vmatprep.subr.mxu0 %v227
  %640 = vmatpush1.msra.mxu0 %v226
  %641 = vmatprep.subr.mxu0 %v235
  %642 = vmatpush1.msra.mxu0 %v234
  %643 = vmatprep.subr.mxu0 %v243
  %644 = vmatpush1.msra.mxu0 %v242
  %645 = vmatprep.subr.mxu0 %v251
  %646 = vmatpush1.msra.mxu0 %v250
  %647 = vmatprep.subr.mxu0 %v259
  %648 = vmatpush1.msra.mxu0 %v258
  %649 = vmatprep.subr.mxu0 %v267
  %650 = vmatpush1.msra.mxu0 %v266
  %651 = vmatprep.mubr.f32.mxu0 %v443
  %652 = vmatmul.mubr.f32.gmra.mrb[0].mxu0 %v14
  %v653 = vpop.f32.mrb[0].mxu0
  %v654 = vadd.f32 %v413, %v653
  %v655 = vpop.f32.mrb[0].mxu0
  %v656 = vadd.f32 %v417, %v655
  %657 = vdwg.mxu0
  %658 = vmatprep.subr.mxu0 %v275
  %659 = vmatpush1.msra.mxu0 %v274
  %660 = vmatprep.subr.mxu0 %v283
  %661 = vmatpush1.msra.mxu0 %v282
  %662 = vmatprep.subr.mxu0 %v291
  %663 = vmatpush1.msra.mxu0 %v290
  %664 = vmatprep.subr.mxu0 %v299
  %665 = vmatpush1.msra.mxu0 %v298
  %666 = vmatprep.subr.mxu0 %v307
  %667 = vmatpush1.msra.mxu0 %v306
  %668 = vmatprep.subr.mxu0 %v315
  %669 = vmatpush1.msra.mxu0 %v314
  %670 = vmatprep.subr.mxu0 %v323
  %671 = vmatpush1.msra.mxu0 %v322
  %672 = vmatprep.subr.mxu0 %v331
  %673 = vmatpush1.msra.mxu0 %v330
  %674 = vmatprep.subr.mxu0 %v339
  %675 = vmatpush1.msra.mxu0 %v338
  %676 = vmatprep.subr.mxu0 %v347
  %677 = vmatpush1.msra.mxu0 %v346
  %678 = vmatprep.subr.mxu0 %v355
  %679 = vmatpush1.msra.mxu0 %v354
  %680 = vmatprep.subr.mxu0 %v363
  %681 = vmatpush1.msra.mxu0 %v362
  %682 = vmatprep.subr.mxu0 %v371
  %683 = vmatpush1.msra.mxu0 %v370
  %684 = vmatprep.subr.mxu0 %v379
  %685 = vmatpush1.msra.mxu0 %v378
  %686 = vmatprep.subr.mxu0 %v387
  %687 = vmatpush1.msra.mxu0 %v386
  %688 = vmatprep.subr.mxu0 %v395
  %689 = vmatpush1.msra.mxu0 %v394
  %690 = vmatprep.subr.mxu0 0.0
  %691 = vmatpush1.msra.mxu0 0.0
  %692 = vmatprep.subr.mxu0 0.0
  %693 = vmatpush1.msra.mxu0 0.0
  %694 = vmatprep.subr.mxu0 0.0
  %695 = vmatpush1.msra.mxu0 0.0
  %696 = vmatprep.subr.mxu0 0.0
  %697 = vmatpush1.msra.mxu0 0.0
  %698 = vmatprep.subr.mxu0 0.0
  %699 = vmatpush1.msra.mxu0 0.0
  %700 = vmatprep.subr.mxu0 0.0
  %701 = vmatpush1.msra.mxu0 0.0
  %702 = vmatprep.subr.mxu0 0.0
  %703 = vmatpush1.msra.mxu0 0.0
  %704 = vmatprep.subr.mxu0 0.0
  %705 = vmatpush1.msra.mxu0 0.0
  %706 = vmatprep.subr.mxu0 0.0
  %707 = vmatpush1.msra.mxu0 0.0
  %708 = vmatprep.subr.mxu0 0.0
  %709 = vmatpush1.msra.mxu0 0.0
  %710 = vmatprep.subr.mxu0 0.0
  %711 = vmatpush1.msra.mxu0 0.0
  %712 = vmatprep.subr.mxu0 0.0
  %713 = vmatpush1.msra.mxu0 0.0
  %714 = vmatprep.subr.mxu0 0.0
  %715 = vmatpush1.msra.mxu0 0.0
  %716 = vmatprep.subr.mxu0 0.0
  %717 = vmatpush1.msra.mxu0 0.0
  %718 = vmatprep.subr.mxu0 0.0
  %719 = vmatpush1.msra.mxu0 0.0
  %720 = vmatprep.subr.mxu0 0.0
  %721 = vmatpush1.msra.mxu0 0.0
  %722 = vmatprep.mubr.f32.mxu0 0.0
  %723 = vmatmul.mubr.f32.gmra.mrb[0].mxu0 %v15
  %v724 = vpop.f32.mrb[0].mxu0
  %v725 = vadd.f32 %v654, %v724
  %v726 = vpop.f32.mrb[0].mxu0
  %v727 = vadd.f32 %v656, %v726
  %728 = vdwg.mxu0
  %729 = vmatprep.subr.mxu0 %v21
  %730 = vmatpush1.msra.mxu0 %v20
  %731 = vmatprep.subr.mxu0 %v29
  %732 = vmatpush1.msra.mxu0 %v28
  %733 = vmatprep.subr.mxu0 %v37
  %734 = vmatpush1.msra.mxu0 %v36
  %735 = vmatprep.subr.mxu0 %v45
  %736 = vmatpush1.msra.mxu0 %v44
  %737 = vmatprep.subr.mxu0 %v53
  %738 = vmatpush1.msra.mxu0 %v52
  %739 = vmatprep.subr.mxu0 %v61
  %740 = vmatpush1.msra.mxu0 %v60
  %741 = vmatprep.subr.mxu0 %v69
  %742 = vmatpush1.msra.mxu0 %v68
  %743 = vmatprep.subr.mxu0 %v77
  %744 = vmatpush1.msra.mxu0 %v76
  %745 = vmatprep.subr.mxu0 %v85
  %746 = vmatpush1.msra.mxu0 %v84
  %747 = vmatprep.subr.mxu0 %v93
  %748 = vmatpush1.msra.mxu0 %v92
  %749 = vmatprep.subr.mxu0 %v101
  %750 = vmatpush1.msra.mxu0 %v100
  %751 = vmatprep.subr.mxu0 %v109
  %752 = vmatpush1.msra.mxu0 %v108
  %753 = vmatprep.subr.mxu0 %v117
  %754 = vmatpush1.msra.mxu0 %v116
  %755 = vmatprep.subr.mxu0 %v125
  %756 = vmatpush1.msra.mxu0 %v124
  %757 = vmatprep.subr.mxu0 %v133
  %758 = vmatpush1.msra.mxu0 %v132
  %759 = vmatprep.subr.mxu0 %v141
  %760 = vmatpush1.msra.mxu0 %v140
  %761 = vmatprep.subr.mxu0 %v149
  %762 = vmatpush1.msra.mxu0 %v148
  %763 = vmatprep.subr.mxu0 %v157
  %764 = vmatpush1.msra.mxu0 %v156
  %765 = vmatprep.subr.mxu0 %v165
  %766 = vmatpush1.msra.mxu0 %v164
  %767 = vmatprep.subr.mxu0 %v173
  %768 = vmatpush1.msra.mxu0 %v172
  %769 = vmatprep.subr.mxu0 %v181
  %770 = vmatpush1.msra.mxu0 %v180
  %771 = vmatprep.subr.mxu0 %v189
  %772 = vmatpush1.msra.mxu0 %v188
  %773 = vmatprep.subr.mxu0 %v197
  %774 = vmatpush1.msra.mxu0 %v196
  %775 = vmatprep.subr.mxu0 %v205
  %776 = vmatpush1.msra.mxu0 %v204
  %777 = vmatprep.subr.mxu0 %v213
  %778 = vmatpush1.msra.mxu0 %v212
  %779 = vmatprep.subr.mxu0 %v221
  %780 = vmatpush1.msra.mxu0 %v220
  %781 = vmatprep.subr.mxu0 %v229
  %782 = vmatpush1.msra.mxu0 %v228
  %783 = vmatprep.subr.mxu0 %v237
  %784 = vmatpush1.msra.mxu0 %v236
  %785 = vmatprep.subr.mxu0 %v245
  %786 = vmatpush1.msra.mxu0 %v244
  %787 = vmatprep.subr.mxu0 %v253
  %788 = vmatpush1.msra.mxu0 %v252
  %789 = vmatprep.subr.mxu0 %v261
  %790 = vmatpush1.msra.mxu0 %v260
  %791 = vmatprep.subr.mxu0 %v269
  %792 = vmatpush1.msra.mxu0 %v268
  %793 = vmatprep.mubr.f32.mxu0 %v443
  %794 = vmatmul.mubr.f32.gmra.mrb[0].mxu0 %v14
  %v795 = vpop.f32.mrb[0].mxu0
  %v796 = vadd.f32 %v421, %v795
  %v797 = vpop.f32.mrb[0].mxu0
  %v798 = vadd.f32 %v425, %v797
  %799 = vdwg.mxu0
  %800 = vmatprep.subr.mxu0 %v277
  %801 = vmatpush1.msra.mxu0 %v276
  %802 = vmatprep.subr.mxu0 %v285
  %803 = vmatpush1.msra.mxu0 %v284
  %804 = vmatprep.subr.mxu0 %v293
  %805 = vmatpush1.msra.mxu0 %v292
  %806 = vmatprep.subr.mxu0 %v301
  %807 = vmatpush1.msra.mxu0 %v300
  %808 = vmatprep.subr.mxu0 %v309
  %809 = vmatpush1.msra.mxu0 %v308
  %810 = vmatprep.subr.mxu0 %v317
  %811 = vmatpush1.msra.mxu0 %v316
  %812 = vmatprep.subr.mxu0 %v325
  %813 = vmatpush1.msra.mxu0 %v324
  %814 = vmatprep.subr.mxu0 %v333
  %815 = vmatpush1.msra.mxu0 %v332
  %816 = vmatprep.subr.mxu0 %v341
  %817 = vmatpush1.msra.mxu0 %v340
  %818 = vmatprep.subr.mxu0 %v349
  %819 = vmatpush1.msra.mxu0 %v348
  %820 = vmatprep.subr.mxu0 %v357
  %821 = vmatpush1.msra.mxu0 %v356
  %822 = vmatprep.subr.mxu0 %v365
  %823 = vmatpush1.msra.mxu0 %v364
  %824 = vmatprep.subr.mxu0 %v373
  %825 = vmatpush1.msra.mxu0 %v372
  %826 = vmatprep.subr.mxu0 %v381
  %827 = vmatpush1.msra.mxu0 %v380
  %828 = vmatprep.subr.mxu0 %v389
  %829 = vmatpush1.msra.mxu0 %v388
  %830 = vmatprep.subr.mxu0 %v397
  %831 = vmatpush1.msra.mxu0 %v396
  %832 = vmatprep.subr.mxu0 0.0
  %833 = vmatpush1.msra.mxu0 0.0
  %834 = vmatprep.subr.mxu0 0.0
  %835 = vmatpush1.msra.mxu0 0.0
  %836 = vmatprep.subr.mxu0 0.0
  %837 = vmatpush1.msra.mxu0 0.0
  %838 = vmatprep.subr.mxu0 0.0
  %839 = vmatpush1.msra.mxu0 0.0
  %840 = vmatprep.subr.mxu0 0.0
  %841 = vmatpush1.msra.mxu0 0.0
  %842 = vmatprep.subr.mxu0 0.0
  %843 = vmatpush1.msra.mxu0 0.0
  %844 = vmatprep.subr.mxu0 0.0
  %845 = vmatpush1.msra.mxu0 0.0
  %846 = vmatprep.subr.mxu0 0.0
  %847 = vmatpush1.msra.mxu0 0.0
  %848 = vmatprep.subr.mxu0 0.0
  %849 = vmatpush1.msra.mxu0 0.0
  %850 = vmatprep.subr.mxu0 0.0
  %851 = vmatpush1.msra.mxu0 0.0
  %852 = vmatprep.subr.mxu0 0.0
  %853 = vmatpush1.msra.mxu0 0.0
  %854 = vmatprep.subr.mxu0 0.0
  %855 = vmatpush1.msra.mxu0 0.0
  %856 = vmatprep.subr.mxu0 0.0
  %857 = vmatpush1.msra.mxu0 0.0
  %858 = vmatprep.subr.mxu0 0.0
  %859 = vmatpush1.msra.mxu0 0.0
  %860 = vmatprep.subr.mxu0 0.0
  %861 = vmatpush1.msra.mxu0 0.0
  %862 = vmatprep.subr.mxu0 0.0
  %863 = vmatpush1.msra.mxu0 0.0
  %864 = vmatprep.mubr.f32.mxu0 0.0
  %865 = vmatmul.mubr.f32.gmra.mrb[0].mxu0 %v15
  %v866 = vpop.f32.mrb[0].mxu0
  %v867 = vadd.f32 %v796, %v866
  %v868 = vpop.f32.mrb[0].mxu0
  %v869 = vadd.f32 %v798, %v868
  %870 = vdwg.mxu0
  %871 = vmatprep.subr.mxu0 %v23
  %872 = vmatpush1.msra.mxu0 %v22
  %873 = vmatprep.subr.mxu0 %v31
  %874 = vmatpush1.msra.mxu0 %v30
  %875 = vmatprep.subr.mxu0 %v39
  %876 = vmatpush1.msra.mxu0 %v38
  %877 = vmatprep.subr.mxu0 %v47
  %878 = vmatpush1.msra.mxu0 %v46
  %879 = vmatprep.subr.mxu0 %v55
  %880 = vmatpush1.msra.mxu0 %v54
  %881 = vmatprep.subr.mxu0 %v63
  %882 = vmatpush1.msra.mxu0 %v62
  %883 = vmatprep.subr.mxu0 %v71
  %884 = vmatpush1.msra.mxu0 %v70
  %885 = vmatprep.subr.mxu0 %v79
  %886 = vmatpush1.msra.mxu0 %v78
  %887 = vmatprep.subr.mxu0 %v87
  %888 = vmatpush1.msra.mxu0 %v86
  %889 = vmatprep.subr.mxu0 %v95
  %890 = vmatpush1.msra.mxu0 %v94
  %891 = vmatprep.subr.mxu0 %v103
  %892 = vmatpush1.msra.mxu0 %v102
  %893 = vmatprep.subr.mxu0 %v111
  %894 = vmatpush1.msra.mxu0 %v110
  %895 = vmatprep.subr.mxu0 %v119
  %896 = vmatpush1.msra.mxu0 %v118
  %897 = vmatprep.subr.mxu0 %v127
  %898 = vmatpush1.msra.mxu0 %v126
  %899 = vmatprep.subr.mxu0 %v135
  %900 = vmatpush1.msra.mxu0 %v134
  %901 = vmatprep.subr.mxu0 %v143
  %902 = vmatpush1.msra.mxu0 %v142
  %903 = vmatprep.subr.mxu0 %v151
  %904 = vmatpush1.msra.mxu0 %v150
  %905 = vmatprep.subr.mxu0 %v159
  %906 = vmatpush1.msra.mxu0 %v158
  %907 = vmatprep.subr.mxu0 %v167
  %908 = vmatpush1.msra.mxu0 %v166
  %909 = vmatprep.subr.mxu0 %v175
  %910 = vmatpush1.msra.mxu0 %v174
  %911 = vmatprep.subr.mxu0 %v183
  %912 = vmatpush1.msra.mxu0 %v182
  %913 = vmatprep.subr.mxu0 %v191
  %914 = vmatpush1.msra.mxu0 %v190
  %915 = vmatprep.subr.mxu0 %v199
  %916 = vmatpush1.msra.mxu0 %v198
  %917 = vmatprep.subr.mxu0 %v207
  %918 = vmatpush1.msra.mxu0 %v206
  %919 = vmatprep.subr.mxu0 %v215
  %920 = vmatpush1.msra.mxu0 %v214
  %921 = vmatprep.subr.mxu0 %v223
  %922 = vmatpush1.msra.mxu0 %v222
  %923 = vmatprep.subr.mxu0 %v231
  %924 = vmatpush1.msra.mxu0 %v230
  %925 = vmatprep.subr.mxu0 %v239
  %926 = vmatpush1.msra.mxu0 %v238
  %927 = vmatprep.subr.mxu0 %v247
  %928 = vmatpush1.msra.mxu0 %v246
  %929 = vmatprep.subr.mxu0 %v255
  %930 = vmatpush1.msra.mxu0 %v254
  %931 = vmatprep.subr.mxu0 %v263
  %932 = vmatpush1.msra.mxu0 %v262
  %933 = vmatprep.subr.mxu0 %v271
  %934 = vmatpush1.msra.mxu0 %v270
  %935 = vmatprep.mubr.f32.mxu0 %v443
  %936 = vmatmul.mubr.f32.gmra.mrb[0].mxu0 %v14
  %v937 = vpop.f32.mrb[0].mxu0
  %v938 = vadd.f32 %v429, %v937
  %v939 = vpop.f32.mrb[0].mxu0
  %v940 = vadd.f32 %v433, %v939
  %941 = vdwg.mxu0
  %942 = vmatprep.subr.mxu0 %v279
  %943 = vmatpush1.msra.mxu0 %v278
  %944 = vmatprep.subr.mxu0 %v287
  %945 = vmatpush1.msra.mxu0 %v286
  %946 = vmatprep.subr.mxu0 %v295
  %947 = vmatpush1.msra.mxu0 %v294
  %948 = vmatprep.subr.mxu0 %v303
  %949 = vmatpush1.msra.mxu0 %v302
  %950 = vmatprep.subr.mxu0 %v311
  %951 = vmatpush1.msra.mxu0 %v310
  %952 = vmatprep.subr.mxu0 %v319
  %953 = vmatpush1.msra.mxu0 %v318
  %954 = vmatprep.subr.mxu0 %v327
  %955 = vmatpush1.msra.mxu0 %v326
  %956 = vmatprep.subr.mxu0 %v335
  %957 = vmatpush1.msra.mxu0 %v334
  %958 = vmatprep.subr.mxu0 %v343
  %959 = vmatpush1.msra.mxu0 %v342
  %960 = vmatprep.subr.mxu0 %v351
  %961 = vmatpush1.msra.mxu0 %v350
  %962 = vmatprep.subr.mxu0 %v359
  %963 = vmatpush1.msra.mxu0 %v358
  %964 = vmatprep.subr.mxu0 %v367
  %965 = vmatpush1.msra.mxu0 %v366
  %966 = vmatprep.subr.mxu0 %v375
  %967 = vmatpush1.msra.mxu0 %v374
  %968 = vmatprep.subr.mxu0 %v383
  %969 = vmatpush1.msra.mxu0 %v382
  %970 = vmatprep.subr.mxu0 %v391
  %971 = vmatpush1.msra.mxu0 %v390
  %972 = vmatprep.subr.mxu0 %v399
  %973 = vmatpush1.msra.mxu0 %v398
  %974 = vmatprep.subr.mxu0 0.0
  %975 = vmatpush1.msra.mxu0 0.0
  %976 = vmatprep.subr.mxu0 0.0
  %977 = vmatpush1.msra.mxu0 0.0
  %978 = vmatprep.subr.mxu0 0.0
  %979 = vmatpush1.msra.mxu0 0.0
  %980 = vmatprep.subr.mxu0 0.0
  %981 = vmatpush1.msra.mxu0 0.0
  %982 = vmatprep.subr.mxu0 0.0
  %983 = vmatpush1.msra.mxu0 0.0
  %984 = vmatprep.subr.mxu0 0.0
  %985 = vmatpush1.msra.mxu0 0.0
  %986 = vmatprep.subr.mxu0 0.0
  %987 = vmatpush1.msra.mxu0 0.0
  %988 = vmatprep.subr.mxu0 0.0
  %989 = vmatpush1.msra.mxu0 0.0
  %990 = vmatprep.subr.mxu0 0.0
  %991 = vmatpush1.msra.mxu0 0.0
  %992 = vmatprep.subr.mxu0 0.0
  %993 = vmatpush1.msra.mxu0 0.0
  %994 = vmatprep.subr.mxu0 0.0
  %995 = vmatpush1.msra.mxu0 0.0
  %996 = vmatprep.subr.mxu0 0.0
  %997 = vmatpush1.msra.mxu0 0.0
  %998 = vmatprep.subr.mxu0 0.0
  %999 = vmatpush1.msra.mxu0 0.0
  %1000 = vmatprep.subr.mxu0 0.0
  %1001 = vmatpush1.msra.mxu0 0.0
  %1002 = vmatprep.subr.mxu0 0.0
  %1003 = vmatpush1.msra.mxu0 0.0
  %1004 = vmatprep.subr.mxu0 0.0
  %1005 = vmatpush1.msra.mxu0 0.0
  %1006 = vmatprep.mubr.f32.mxu0 0.0
  %1007 = vmatmul.mubr.f32.gmra.mrb[0].mxu0 %v15
  %v1008 = vpop.f32.mrb[0].mxu0
  %v1009 = vadd.f32 %v938, %v1008
  %v1010 = vpop.f32.mrb[0].mxu0
  %v1011 = vadd.f32 %v940, %v1010
  %1012 = vdwg.mxu0
  %v1013 = vmax.f32 %v583, 0.01
  %v1014 = vmax.f32 %v585, 0.01
  %v1015 = vmax.f32 %v725, 0.01
  %v1016 = vmax.f32 %v727, 0.01
  %v1017 = vmax.f32 %v867, 0.01
  %v1018 = vmax.f32 %v869, 0.01
  %v1019 = vmax.f32 %v1009, 0.01
  %v1020 = vmax.f32 %v1011, 0.01
  %v1021 = vmin.f32 %v1013, 0.02
  %v1022 = vmin.f32 %v1014, 0.02
  %v1023 = vmin.f32 %v1015, 0.02
  %v1024 = vmin.f32 %v1016, 0.02
  %v1025 = vmin.f32 %v1017, 0.02
  %v1026 = vmin.f32 %v1018, 0.02
  %v1027 = vmin.f32 %v1019, 0.02
  %v1028 = vmin.f32 %v1020, 0.02
  %v1037 = vcombine.low %v1021, %v1022
  %v1038 = vcombine.low %v1023, %v1024
  %v1039 = vcombine.low %v1025, %v1026
  %v1040 = vcombine.low %v1027, %v1028
  %1045 = vst [vmem:[%s3] sm:$0xff] %v1037
  %1046 = vst [vmem:[%s3 + $0x8] sm:$0xff] %v1038
  %1047 = vst [vmem:[%s3 + $0x10] sm:$0xff] %v1039
  %1048 = vst [vmem:[%s3 + $0x18] sm:$0xff] %v1040
  // Predicated region
  $region14: #{linear_clamp.1} parent=0 // pred_check
    _
  $region15: #{linear_clamp.1} parent=0 // pred_check_branch
    %1050 = sbr.rel (0) target = $region17
  $region16: #{linear_clamp.1} parent=0 // pred_region
    _
  $region17: #{linear_clamp.1} parent=0 // pred_fallthru
    _
  // Predicated region
  $region18: #{linear_clamp.1} parent=0 // pred_check
    _
  $region19: #{linear_clamp.1} parent=0 // pred_check_branch
    %1052 = sbr.rel (0) target = $region21
  $region20: #{linear_clamp.1} parent=0 // pred_region
    _
  $region21: #{linear_clamp.1} parent=0 // pred_fallthru
    _

</llo_original>
